<compile_context>
chip_gen: v5e
topology: v5e:2x2
jax: 0.10.0
libtpu: 0.0.40
codegen_flags: <defaults>
</compile_context>

<pallas_src>
import functools

import jax
import jax.numpy as jnp
from jax.experimental import pallas as pl
from jax.experimental.pallas import tpu as pltpu


def _cross_attn_kernel(q_ref, k_ref, v_ref,
                       wq_ref, bq_ref,
                       wk_ref, wv_ref,
                       wp_ref, bp_ref,
                       o_ref,
                       *, n_heads):
    block_b, t_q, c = q_ref.shape
    t_kv = k_ref.shape[1]
    head_size = c // n_heads

    # ---- Projections: flatten (block_b, T, C) -> (block_b*T, C) so the MXU
    # sees a large M dim.  Bias-add + bf16 cast are fused into one expression
    # so the f32 projection results do not stay live (lower spill pressure).
    # Softmax scale is pre-folded into wq/bq; k has no bias (softmax
    # shift-invariance) and bv is folded into bp by the wrapper.
    xq = q_ref[...].reshape(block_b * t_q, c).astype(jnp.bfloat16)
    xk = k_ref[...].reshape(block_b * t_kv, c).astype(jnp.bfloat16)
    xv = v_ref[...].reshape(block_b * t_kv, c).astype(jnp.bfloat16)

    q3 = (jnp.dot(xq, wq_ref[...], preferred_element_type=jnp.float32)
          + bq_ref[...]).astype(jnp.bfloat16).reshape(block_b, t_q, c)
    k3 = jnp.dot(xk, wk_ref[...],
                 preferred_element_type=jnp.float32
                 ).astype(jnp.bfloat16).reshape(block_b, t_kv, c)
    v3 = jnp.dot(xv, wv_ref[...],
                 preferred_element_type=jnp.float32
                 ).astype(jnp.bfloat16).reshape(block_b, t_kv, c)

    # ---- Per-head attention.  Per-head contexts are collected and
    # concatenated so the output projection is a single K=C matmul after the
    # loop (instead of n_heads small K=head_size matmuls + accumulator adds).
    # NOTE: head slices are lane-sub-128 when head_size < 128 (relayout cost
    # paid per slice); acceptable at these head counts.
    # TODO(synk): for long Tkv, block over keys with an online-softmax
    # (flash-style) accumulator instead of full (Tq, Tkv) f32 scores.
    ctx_heads = []
    for h in range(n_heads):
        lo = h * head_size
        qh = q3[:, :, lo:lo + head_size]          # (Bb, Tq, Dh)
        kh = k3[:, :, lo:lo + head_size]          # (Bb, Tkv, Dh)
        vh = v3[:, :, lo:lo + head_size]          # (Bb, Tkv, Dh)

        s = jnp.einsum('bqd,bkd->bqk', qh, kh,
                       preferred_element_type=jnp.float32)   # (Bb, Tq, Tkv)
        # numerically-stable softmax in f32; division -> EUP approx reciprocal
        m = jnp.max(s, axis=-1, keepdims=True)
        e = jnp.exp(s - m)
        denom = jnp.sum(e, axis=-1, keepdims=True)
        p = (e * pl.reciprocal(denom, approx=True)).astype(jnp.bfloat16)
        # TODO(synk): attn_dropout / resid_dropout are identity in eval mode.

        ctx_heads.append(jnp.einsum('bqk,bkd->bqd', p, vh,
                                    preferred_element_type=jnp.float32
                                    ).astype(jnp.bfloat16))   # (Bb, Tq, Dh)

    ctx = jnp.concatenate(ctx_heads, axis=-1).reshape(block_b * t_q, c)

    # ---- Output projection: one fat (M, C) @ (C, C) MXU matmul, K = C.
    out = jnp.dot(ctx, wp_ref[...], preferred_element_type=jnp.float32) + bp_ref[...]
    o_ref[...] = out.reshape(block_b, t_q, c).astype(o_ref.dtype)


def _tpu_vmem_capacity_bytes():
    """Physical VMEM per core; conservative fallback if the query fails."""
    try:
        return int(pltpu.get_tpu_info().vmem_capacity_bytes)
    except Exception:
        return 64 * 1024 * 1024   # v7x per-TC capacity (smallest current gen)


def _vmem_bytes_estimate(block_b, t_q, t_kv, c, in_bytes, out_bytes):
    """Rough resident-VMEM estimate for one grid step (bounds block_b)."""
    bf16, f32 = 2, 4
    # Pipelined activation blocks are double-buffered by Pallas.
    acts = 2 * (block_b * t_q * c * in_bytes          # q block
                + 2 * block_b * t_kv * c * in_bytes   # k, v blocks
                + block_b * t_q * c * out_bytes)      # out block
    # (C, C) weights single-buffered (pl.Buffered(1), constant index_map).
    weights = 4 * c * c * bf16 + 2 * c * f32
    # Live in-kernel intermediates: bf16 x/q/k/v copies, one head's f32
    # scores + exp, bf16 ctx buffer, f32 projected output.
    interm = ((block_b * t_q + 2 * block_b * t_kv) * c * 2 * bf16
              + 2 * block_b * t_q * t_kv * f32
              + block_b * t_q * c * (bf16 + f32))
    return acts + weights + interm


def _choose_block_b(B, t_q, t_kv, c, in_bytes, out_bytes, vmem_budget):
    """Pick how many batch elements to fold per grid step.

    Priorities: fit the VMEM budget, reach M >= 256 in the projection matmuls,
    keep >= 2 grid steps, prefer an EVEN step count (balances the 'parallel'
    axis across v7x's 2 TensorCores); among equals take the largest block
    (fewer steps amortize the ~0.35 us per-grid-step overhead).
    """
    divisors = [d for d in range(1, B + 1) if B % d == 0]
    fitting = [d for d in divisors
               if _vmem_bytes_estimate(d, t_q, t_kv, c, in_bytes, out_bytes)
               <= vmem_budget]
    if not fitting:
        fitting = [1]

    def score(d):
        steps = B // d
        return (int(d * t_q >= 256) * 4
                + int(steps >= 2) * 2
                + int(steps % 2 == 0),
                d)
    return max(fitting, key=score)


def cross_attention(q, k, v, params, *, n_heads, block_b=None, out_dtype=None):
    """q: (B, Tq, C); k, v: (B, Tkv, C). Returns (B, Tq, C) in `out_dtype`
    (default q.dtype; pass jnp.bfloat16 to halve output writeback bytes)."""
    B, Tq, C = q.shape
    Tkv = k.shape[1]
    assert C % n_heads == 0, "embed_dim must be divisible by number of heads"
    head_size = C // n_heads
    scale = float(head_size) ** (-0.5)
    out_dtype = q.dtype if out_dtype is None else out_dtype

    wq, bq, wk, bk, wv, bv, wp, bp = params
    # Pre-transpose PyTorch-style (out, in) weights to (in, out) bf16; fold the
    # softmax scale into Wq/bq; drop bk; fold bv into the output bias (all
    # folds computed in f32 in the wrapper, so they are exact).
    wq_t = (wq.T * scale).astype(jnp.bfloat16)
    wk_t = wk.T.astype(jnp.bfloat16)
    wv_t = wv.T.astype(jnp.bfloat16)
    wp_t = wp.T.astype(jnp.bfloat16)
    bq2 = (bq * scale).reshape(1, C).astype(jnp.float32)
    bp2 = (bp + bv @ wp.T).reshape(1, C).astype(jnp.float32)
    # TODO(synk): if k and v are always the same context tensor, fuse Wk|Wv
    # into one (C, 2C) weight and DMA the context only once.

    vmem_limit = int(0.9 * _tpu_vmem_capacity_bytes())
    in_bytes = jnp.dtype(q.dtype).itemsize
    out_bytes = jnp.dtype(out_dtype).itemsize
    if block_b is None:
        block_b = _choose_block_b(B, Tq, Tkv, C, in_bytes, out_bytes,
                                  vmem_budget=int(0.8 * vmem_limit))
    assert B % block_b == 0, "batch must be divisible by block_b"

    kernel = functools.partial(_cross_attn_kernel, n_heads=n_heads)

    def run(single_buffer_weights):
        wt_pm = pl.Buffered(1) if single_buffer_weights else None
        act_q_spec = pl.BlockSpec((block_b, Tq, C), lambda i: (i, 0, 0))
        act_kv_spec = pl.BlockSpec((block_b, Tkv, C), lambda i: (i, 0, 0))
        # Weights/biases revisit the same block every step (constant index_map
        # -> single DMA); single-buffer the (C, C) weights to halve footprint.
        w_spec = pl.BlockSpec((C, C), lambda i: (0, 0), pipeline_mode=wt_pm)
        b_spec = pl.BlockSpec((1, C), lambda i: (0, 0))
        return pl.pallas_call(
            kernel,
            out_shape=jax.ShapeDtypeStruct((B, Tq, C), out_dtype),
            grid_spec=pltpu.PrefetchScalarGridSpec(
                num_scalar_prefetch=0,
                grid=(B // block_b,),
                in_specs=[act_q_spec, act_kv_spec, act_kv_spec,
                          w_spec, b_spec, w_spec, w_spec, w_spec, b_spec],
                out_specs=pl.BlockSpec((block_b, Tq, C), lambda i: (i, 0, 0)),
            ),
            compiler_params=pltpu.CompilerParams(
                dimension_semantics=("parallel",),
                vmem_limit_bytes=vmem_limit),
        )(q, k, v, wq_t, bq2, wk_t, wv_t, wp_t, bp2)

    try:
        return run(True)
    except Exception:
        # Fallback for environments where Buffered(1) single-buffering is
        # unsupported; identical semantics, double-buffered weights.
        return run(False)


def cross_attention_ref(q, k, v, params, *, n_heads):
    """Pure-JAX f32 reference mirroring the PyTorch forward (dropout = identity)."""
    B, Tq, C = q.shape
    head_size = C // n_heads
    scale = float(head_size) ** (-0.5)
    wq, bq, wk, bk, wv, bv, wp, bp = params

    def lin(x, w, b):
        return jnp.einsum('btc,oc->bto', x, w) + b

    qp = lin(q, wq, bq).reshape(B, Tq, n_heads, head_size).transpose(0, 2, 1, 3)
    kp = lin(k, wk, bk).reshape(B, -1, n_heads, head_size).transpose(0, 2, 1, 3)
    vp = lin(v, wv, bv).reshape(B, -1, n_heads, head_size).transpose(0, 2, 1, 3)
    att = jnp.einsum('bhqd,bhkd->bhqk', qp, kp) * scale
    att = jax.nn.softmax(att, axis=-1)
    out = jnp.einsum('bhqk,bhkd->bhqd', att, vp)
    out = out.transpose(0, 2, 1, 3).reshape(B, Tq, C)
    return lin(out, wp, bp)


def init_params(key, embed_dim, bias_scale=0.0):
    """PyTorch-style init: Linear weight ~ N(0, 0.02), bias = 0 (optionally
    non-zero to exercise the bias-folding paths)."""
    ks = jax.random.split(key, 8)
    std = 0.02

    def w(i):
        return std * jax.random.normal(ks[i], (embed_dim, embed_dim), jnp.float32)

    def b(i):
        if bias_scale == 0.0:
            return jnp.zeros((embed_dim,), jnp.float32)
        return bias_scale * jax.random.normal(ks[i], (embed_dim,), jnp.float32)

    return (w(0), b(4), w(1), b(5), w(2), b(6), w(3), b(7))


def _run_and_check(B, Tq, Tkv, C, H, seed, bias_scale=0.0):
    key = jax.random.PRNGKey(seed)
    kq, kk, kv, kp = jax.random.split(key, 4)
    q_in = jax.random.normal(kq, (B, Tq, C), jnp.float32)
    k_in = jax.random.normal(kk, (B, Tkv, C), jnp.float32)
    v_in = jax.random.normal(kv, (B, Tkv, C), jnp.float32)
    params = init_params(kp, C, bias_scale)

    out = cross_attention(q_in, k_in, v_in, params, n_heads=H)
    out = jax.block_until_ready(out)

    ref = cross_attention_ref(q_in, k_in, v_in, params, n_heads=H)
    assert out.shape == (B, Tq, C)
    # bf16 MXU operands with f32 accumulation -> tolerance looser than pure f32.
    assert jnp.allclose(out, ref, atol=3e-3, rtol=1e-2), \
        f"mismatch vs pure-JAX reference at B={B} T={Tq}/{Tkv} C={C} H={H}"


if __name__ == "__main__":
    # Small config consistent with the module: embed_dim=32, num_heads=4, seq_len=8.
    _run_and_check(B=2, Tq=8, Tkv=8, C=32, H=4, seed=0)
    # Non-zero biases exercise the scale/bk/bv folding paths.
    _run_and_check(B=2, Tq=8, Tkv=8, C=32, H=4, seed=1, bias_scale=0.02)
    # Lane-dense config (C multiple of 128) exercising batch folding (block_b=2).
    _run_and_check(B=4, Tq=128, Tkv=128, C=128, H=8, seed=0)

    print("KERNEL_OK")
</pallas_src>

<mosaic_0001>
module attributes {stable_mosaic.version = 11 : i64} {
  func.func @_cross_attn_kernel(%arg0: i32, %arg1: memref<1x8x32xf32, #tpu.memory_space<vmem>>, %arg2: memref<1x8x32xf32, #tpu.memory_space<vmem>>, %arg3: memref<1x8x32xf32, #tpu.memory_space<vmem>>, %arg4: memref<32x32xbf16, #tpu.memory_space<vmem>>, %arg5: memref<1x32xf32, #tpu.memory_space<vmem>>, %arg6: memref<32x32xbf16, #tpu.memory_space<vmem>>, %arg7: memref<32x32xbf16, #tpu.memory_space<vmem>>, %arg8: memref<32x32xbf16, #tpu.memory_space<vmem>>, %arg9: memref<1x32xf32, #tpu.memory_space<vmem>>, %arg10: memref<1x8x32xf32, #tpu.memory_space<vmem>>) attributes {dimension_semantics = [#tpu.dimension_semantics<parallel>], iteration_bounds = array<i64: 2>, scalar_prefetch = 0 : i64, scratch_operands = 0 : i64, tpu.core_type = #tpu.core_type<tc>, window_params = [{transform_indices = @transform_0, window_bounds = array<i64: 1, 8, 32>}, {transform_indices = @transform_1, window_bounds = array<i64: 1, 8, 32>}, {transform_indices = @transform_2, window_bounds = array<i64: 1, 8, 32>}, {pipeline_mode = #tpu.pipeline_mode<synchronous>, transform_indices = @transform_3, window_bounds = array<i64: 32, 32>}, {pipeline_mode = #tpu.pipeline_mode<synchronous>, transform_indices = @transform_4, window_bounds = array<i64: 1, 32>}, {pipeline_mode = #tpu.pipeline_mode<synchronous>, transform_indices = @transform_5, window_bounds = array<i64: 32, 32>}, {pipeline_mode = #tpu.pipeline_mode<synchronous>, transform_indices = @transform_6, window_bounds = array<i64: 32, 32>}, {pipeline_mode = #tpu.pipeline_mode<synchronous>, transform_indices = @transform_7, window_bounds = array<i64: 32, 32>}, {pipeline_mode = #tpu.pipeline_mode<synchronous>, transform_indices = @transform_8, window_bounds = array<i64: 1, 32>}, {transform_indices = @transform_9, window_bounds = array<i64: 1, 8, 32>}]} {
    %c0 = arith.constant 0 : index
    %c0_0 = arith.constant 0 : index
    %c0_1 = arith.constant 0 : index
    %0 = vector.load %arg1[%c0, %c0_0, %c0_1] : memref<1x8x32xf32, #tpu.memory_space<vmem>>, vector<1x8x32xf32>
    %1 = vector.shape_cast %0 : vector<1x8x32xf32> to vector<8x32xf32>
    %2 = arith.truncf %1 : vector<8x32xf32> to vector<8x32xbf16>
    %c0_2 = arith.constant 0 : index
    %c0_3 = arith.constant 0 : index
    %c0_4 = arith.constant 0 : index
    %3 = vector.load %arg2[%c0_2, %c0_3, %c0_4] : memref<1x8x32xf32, #tpu.memory_space<vmem>>, vector<1x8x32xf32>
    %4 = vector.shape_cast %3 : vector<1x8x32xf32> to vector<8x32xf32>
    %5 = arith.truncf %4 : vector<8x32xf32> to vector<8x32xbf16>
    %c0_5 = arith.constant 0 : index
    %c0_6 = arith.constant 0 : index
    %c0_7 = arith.constant 0 : index
    %6 = vector.load %arg3[%c0_5, %c0_6, %c0_7] : memref<1x8x32xf32, #tpu.memory_space<vmem>>, vector<1x8x32xf32>
    %7 = vector.shape_cast %6 : vector<1x8x32xf32> to vector<8x32xf32>
    %8 = arith.truncf %7 : vector<8x32xf32> to vector<8x32xbf16>
    %c0_8 = arith.constant 0 : index
    %c0_9 = arith.constant 0 : index
    %9 = vector.load %arg4[%c0_8, %c0_9] : memref<32x32xbf16, #tpu.memory_space<vmem>>, vector<32x32xbf16>
    %cst = arith.constant dense<0.000000e+00> : vector<8x32xf32>
    %10 = tpu.matmul %2, %9, %cst {dimension_numbers = #tpu.dot_dimension_numbers<[1], [0], [0], [1], [0, 0, 1, 1], [], []>} : vector<8x32xbf16>, vector<32x32xbf16>, vector<8x32xf32> -> vector<8x32xf32>
    %c0_10 = arith.constant 0 : index
    %c0_11 = arith.constant 0 : index
    %11 = vector.load %arg5[%c0_10, %c0_11] : memref<1x32xf32, #tpu.memory_space<vmem>>, vector<1x32xf32>
    %12 = vector.broadcast %11 : vector<1x32xf32> to vector<8x32xf32>
    %13 = arith.addf %10, %12 : vector<8x32xf32>
    %14 = arith.truncf %13 : vector<8x32xf32> to vector<8x32xbf16>
    %15 = vector.shape_cast %14 : vector<8x32xbf16> to vector<1x8x32xbf16>
    %c0_12 = arith.constant 0 : index
    %c0_13 = arith.constant 0 : index
    %16 = vector.load %arg6[%c0_12, %c0_13] : memref<32x32xbf16, #tpu.memory_space<vmem>>, vector<32x32xbf16>
    %cst_14 = arith.constant dense<0.000000e+00> : vector<8x32xf32>
    %17 = tpu.matmul %5, %16, %cst_14 {dimension_numbers = #tpu.dot_dimension_numbers<[1], [0], [0], [1], [0, 0, 1, 1], [], []>} : vector<8x32xbf16>, vector<32x32xbf16>, vector<8x32xf32> -> vector<8x32xf32>
    %18 = arith.truncf %17 : vector<8x32xf32> to vector<8x32xbf16>
    %19 = vector.shape_cast %18 : vector<8x32xbf16> to vector<1x8x32xbf16>
    %c0_15 = arith.constant 0 : index
    %c0_16 = arith.constant 0 : index
    %20 = vector.load %arg7[%c0_15, %c0_16] : memref<32x32xbf16, #tpu.memory_space<vmem>>, vector<32x32xbf16>
    %cst_17 = arith.constant dense<0.000000e+00> : vector<8x32xf32>
    %21 = tpu.matmul %8, %20, %cst_17 {dimension_numbers = #tpu.dot_dimension_numbers<[1], [0], [0], [1], [0, 0, 1, 1], [], []>} : vector<8x32xbf16>, vector<32x32xbf16>, vector<8x32xf32> -> vector<8x32xf32>
    %22 = arith.truncf %21 : vector<8x32xf32> to vector<8x32xbf16>
    %23 = vector.shape_cast %22 : vector<8x32xbf16> to vector<1x8x32xbf16>
    %24 = vector.extract_strided_slice %15 {offsets = [0, 0, 0], sizes = [1, 8, 8], strides = [1, 1, 1]} : vector<1x8x32xbf16> to vector<1x8x8xbf16>
    %25 = vector.extract_strided_slice %19 {offsets = [0, 0, 0], sizes = [1, 8, 8], strides = [1, 1, 1]} : vector<1x8x32xbf16> to vector<1x8x8xbf16>
    %26 = vector.extract_strided_slice %23 {offsets = [0, 0, 0], sizes = [1, 8, 8], strides = [1, 1, 1]} : vector<1x8x32xbf16> to vector<1x8x8xbf16>
    "tpu.trace_start"() <{level = 10 : i32, message = "bqd,bkd->bqk"}> : () -> ()
    %cst_18 = arith.constant dense<0.000000e+00> : vector<1x8x8xf32>
    %27 = tpu.matmul %24, %25, %cst_18 {dimension_numbers = #tpu.dot_dimension_numbers<[2], [2], [1], [1], [0, 0, 0, 1, 1, 1], [0], [0]>} : vector<1x8x8xbf16>, vector<1x8x8xbf16>, vector<1x8x8xf32> -> vector<1x8x8xf32>
    "tpu.trace_stop"() : () -> ()
    %cst_19 = arith.constant dense<0xFF800000> : vector<1x8xf32>
    %28 = vector.multi_reduction <maximumf>, %27, %cst_19 [2] : vector<1x8x8xf32> to vector<1x8xf32>
    %29 = vector.shape_cast %28 : vector<1x8xf32> to vector<1x8x1xf32>
    %30 = vector.broadcast %29 : vector<1x8x1xf32> to vector<1x8x8xf32>
    %31 = arith.subf %27, %30 : vector<1x8x8xf32>
    %32 = math.exp %31 : vector<1x8x8xf32>
    %cst_20 = arith.constant dense<0.000000e+00> : vector<1x8xf32>
    %33 = vector.multi_reduction <add>, %32, %cst_20 [2] : vector<1x8x8xf32> to vector<1x8xf32>
    %34 = vector.shape_cast %33 : vector<1x8xf32> to vector<1x8x1xf32>
    %35 = tpu.reciprocal %34 {approx = true} : vector<1x8x1xf32> -> vector<1x8x1xf32>
    %36 = vector.broadcast %35 : vector<1x8x1xf32> to vector<1x8x8xf32>
    %37 = arith.mulf %32, %36 : vector<1x8x8xf32>
    %38 = arith.truncf %37 : vector<1x8x8xf32> to vector<1x8x8xbf16>
    "tpu.trace_start"() <{level = 10 : i32, message = "bqk,bkd->bqd"}> : () -> ()
    %cst_21 = arith.constant dense<0.000000e+00> : vector<1x8x8xf32>
    %39 = tpu.matmul %38, %26, %cst_21 {dimension_numbers = #tpu.dot_dimension_numbers<[2], [1], [1], [2], [0, 0, 0, 1, 1, 2], [0], [0]>} : vector<1x8x8xbf16>, vector<1x8x8xbf16>, vector<1x8x8xf32> -> vector<1x8x8xf32>
    "tpu.trace_stop"() : () -> ()
    %40 = arith.truncf %39 : vector<1x8x8xf32> to vector<1x8x8xbf16>
    %41 = vector.extract_strided_slice %15 {offsets = [0, 0, 8], sizes = [1, 8, 8], strides = [1, 1, 1]} : vector<1x8x32xbf16> to vector<1x8x8xbf16>
    %42 = vector.extract_strided_slice %19 {offsets = [0, 0, 8], sizes = [1, 8, 8], strides = [1, 1, 1]} : vector<1x8x32xbf16> to vector<1x8x8xbf16>
    %43 = vector.extract_strided_slice %23 {offsets = [0, 0, 8], sizes = [1, 8, 8], strides = [1, 1, 1]} : vector<1x8x32xbf16> to vector<1x8x8xbf16>
    "tpu.trace_start"() <{level = 10 : i32, message = "bqd,bkd->bqk"}> : () -> ()
    %cst_22 = arith.constant dense<0.000000e+00> : vector<1x8x8xf32>
    %44 = tpu.matmul %41, %42, %cst_22 {dimension_numbers = #tpu.dot_dimension_numbers<[2], [2], [1], [1], [0, 0, 0, 1, 1, 1], [0], [0]>} : vector<1x8x8xbf16>, vector<1x8x8xbf16>, vector<1x8x8xf32> -> vector<1x8x8xf32>
    "tpu.trace_stop"() : () -> ()
    %cst_23 = arith.constant dense<0xFF800000> : vector<1x8xf32>
    %45 = vector.multi_reduction <maximumf>, %44, %cst_23 [2] : vector<1x8x8xf32> to vector<1x8xf32>
    %46 = vector.shape_cast %45 : vector<1x8xf32> to vector<1x8x1xf32>
    %47 = vector.broadcast %46 : vector<1x8x1xf32> to vector<1x8x8xf32>
    %48 = arith.subf %44, %47 : vector<1x8x8xf32>
    %49 = math.exp %48 : vector<1x8x8xf32>
    %cst_24 = arith.constant dense<0.000000e+00> : vector<1x8xf32>
    %50 = vector.multi_reduction <add>, %49, %cst_24 [2] : vector<1x8x8xf32> to vector<1x8xf32>
    %51 = vector.shape_cast %50 : vector<1x8xf32> to vector<1x8x1xf32>
    %52 = tpu.reciprocal %51 {approx = true} : vector<1x8x1xf32> -> vector<1x8x1xf32>
    %53 = vector.broadcast %52 : vector<1x8x1xf32> to vector<1x8x8xf32>
    %54 = arith.mulf %49, %53 : vector<1x8x8xf32>
    %55 = arith.truncf %54 : vector<1x8x8xf32> to vector<1x8x8xbf16>
    "tpu.trace_start"() <{level = 10 : i32, message = "bqk,bkd->bqd"}> : () -> ()
    %cst_25 = arith.constant dense<0.000000e+00> : vector<1x8x8xf32>
    %56 = tpu.matmul %55, %43, %cst_25 {dimension_numbers = #tpu.dot_dimension_numbers<[2], [1], [1], [2], [0, 0, 0, 1, 1, 2], [0], [0]>} : vector<1x8x8xbf16>, vector<1x8x8xbf16>, vector<1x8x8xf32> -> vector<1x8x8xf32>
    "tpu.trace_stop"() : () -> ()
    %57 = arith.truncf %56 : vector<1x8x8xf32> to vector<1x8x8xbf16>
    %58 = vector.extract_strided_slice %15 {offsets = [0, 0, 16], sizes = [1, 8, 8], strides = [1, 1, 1]} : vector<1x8x32xbf16> to vector<1x8x8xbf16>
    %59 = vector.extract_strided_slice %19 {offsets = [0, 0, 16], sizes = [1, 8, 8], strides = [1, 1, 1]} : vector<1x8x32xbf16> to vector<1x8x8xbf16>
    %60 = vector.extract_strided_slice %23 {offsets = [0, 0, 16], sizes = [1, 8, 8], strides = [1, 1, 1]} : vector<1x8x32xbf16> to vector<1x8x8xbf16>
    "tpu.trace_start"() <{level = 10 : i32, message = "bqd,bkd->bqk"}> : () -> ()
    %cst_26 = arith.constant dense<0.000000e+00> : vector<1x8x8xf32>
    %61 = tpu.matmul %58, %59, %cst_26 {dimension_numbers = #tpu.dot_dimension_numbers<[2], [2], [1], [1], [0, 0, 0, 1, 1, 1], [0], [0]>} : vector<1x8x8xbf16>, vector<1x8x8xbf16>, vector<1x8x8xf32> -> vector<1x8x8xf32>
    "tpu.trace_stop"() : () -> ()
    %cst_27 = arith.constant dense<0xFF800000> : vector<1x8xf32>
    %62 = vector.multi_reduction <maximumf>, %61, %cst_27 [2] : vector<1x8x8xf32> to vector<1x8xf32>
    %63 = vector.shape_cast %62 : vector<1x8xf32> to vector<1x8x1xf32>
    %64 = vector.broadcast %63 : vector<1x8x1xf32> to vector<1x8x8xf32>
    %65 = arith.subf %61, %64 : vector<1x8x8xf32>
    %66 = math.exp %65 : vector<1x8x8xf32>
    %cst_28 = arith.constant dense<0.000000e+00> : vector<1x8xf32>
    %67 = vector.multi_reduction <add>, %66, %cst_28 [2] : vector<1x8x8xf32> to vector<1x8xf32>
    %68 = vector.shape_cast %67 : vector<1x8xf32> to vector<1x8x1xf32>
    %69 = tpu.reciprocal %68 {approx = true} : vector<1x8x1xf32> -> vector<1x8x1xf32>
    %70 = vector.broadcast %69 : vector<1x8x1xf32> to vector<1x8x8xf32>
    %71 = arith.mulf %66, %70 : vector<1x8x8xf32>
    %72 = arith.truncf %71 : vector<1x8x8xf32> to vector<1x8x8xbf16>
    "tpu.trace_start"() <{level = 10 : i32, message = "bqk,bkd->bqd"}> : () -> ()
    %cst_29 = arith.constant dense<0.000000e+00> : vector<1x8x8xf32>
    %73 = tpu.matmul %72, %60, %cst_29 {dimension_numbers = #tpu.dot_dimension_numbers<[2], [1], [1], [2], [0, 0, 0, 1, 1, 2], [0], [0]>} : vector<1x8x8xbf16>, vector<1x8x8xbf16>, vector<1x8x8xf32> -> vector<1x8x8xf32>
    "tpu.trace_stop"() : () -> ()
    %74 = arith.truncf %73 : vector<1x8x8xf32> to vector<1x8x8xbf16>
    %75 = vector.extract_strided_slice %15 {offsets = [0, 0, 24], sizes = [1, 8, 8], strides = [1, 1, 1]} : vector<1x8x32xbf16> to vector<1x8x8xbf16>
    %76 = vector.extract_strided_slice %19 {offsets = [0, 0, 24], sizes = [1, 8, 8], strides = [1, 1, 1]} : vector<1x8x32xbf16> to vector<1x8x8xbf16>
    %77 = vector.extract_strided_slice %23 {offsets = [0, 0, 24], sizes = [1, 8, 8], strides = [1, 1, 1]} : vector<1x8x32xbf16> to vector<1x8x8xbf16>
    "tpu.trace_start"() <{level = 10 : i32, message = "bqd,bkd->bqk"}> : () -> ()
    %cst_30 = arith.constant dense<0.000000e+00> : vector<1x8x8xf32>
    %78 = tpu.matmul %75, %76, %cst_30 {dimension_numbers = #tpu.dot_dimension_numbers<[2], [2], [1], [1], [0, 0, 0, 1, 1, 1], [0], [0]>} : vector<1x8x8xbf16>, vector<1x8x8xbf16>, vector<1x8x8xf32> -> vector<1x8x8xf32>
    "tpu.trace_stop"() : () -> ()
    %cst_31 = arith.constant dense<0xFF800000> : vector<1x8xf32>
    %79 = vector.multi_reduction <maximumf>, %78, %cst_31 [2] : vector<1x8x8xf32> to vector<1x8xf32>
    %80 = vector.shape_cast %79 : vector<1x8xf32> to vector<1x8x1xf32>
    %81 = vector.broadcast %80 : vector<1x8x1xf32> to vector<1x8x8xf32>
    %82 = arith.subf %78, %81 : vector<1x8x8xf32>
    %83 = math.exp %82 : vector<1x8x8xf32>
    %cst_32 = arith.constant dense<0.000000e+00> : vector<1x8xf32>
    %84 = vector.multi_reduction <add>, %83, %cst_32 [2] : vector<1x8x8xf32> to vector<1x8xf32>
    %85 = vector.shape_cast %84 : vector<1x8xf32> to vector<1x8x1xf32>
    %86 = tpu.reciprocal %85 {approx = true} : vector<1x8x1xf32> -> vector<1x8x1xf32>
    %87 = vector.broadcast %86 : vector<1x8x1xf32> to vector<1x8x8xf32>
    %88 = arith.mulf %83, %87 : vector<1x8x8xf32>
    %89 = arith.truncf %88 : vector<1x8x8xf32> to vector<1x8x8xbf16>
    "tpu.trace_start"() <{level = 10 : i32, message = "bqk,bkd->bqd"}> : () -> ()
    %cst_33 = arith.constant dense<0.000000e+00> : vector<1x8x8xf32>
    %90 = tpu.matmul %89, %77, %cst_33 {dimension_numbers = #tpu.dot_dimension_numbers<[2], [1], [1], [2], [0, 0, 0, 1, 1, 2], [0], [0]>} : vector<1x8x8xbf16>, vector<1x8x8xbf16>, vector<1x8x8xf32> -> vector<1x8x8xf32>
    "tpu.trace_stop"() : () -> ()
    %91 = arith.truncf %90 : vector<1x8x8xf32> to vector<1x8x8xbf16>
    %92 = tpu.concatenate %40, %57, %74, %91 in 2 : vector<1x8x8xbf16>, vector<1x8x8xbf16>, vector<1x8x8xbf16>, vector<1x8x8xbf16> -> vector<1x8x32xbf16>
    %93 = vector.shape_cast %92 : vector<1x8x32xbf16> to vector<8x32xbf16>
    %c0_34 = arith.constant 0 : index
    %c0_35 = arith.constant 0 : index
    %94 = vector.load %arg8[%c0_34, %c0_35] : memref<32x32xbf16, #tpu.memory_space<vmem>>, vector<32x32xbf16>
    %cst_36 = arith.constant dense<0.000000e+00> : vector<8x32xf32>
    %95 = tpu.matmul %93, %94, %cst_36 {dimension_numbers = #tpu.dot_dimension_numbers<[1], [0], [0], [1], [0, 0, 1, 1], [], []>} : vector<8x32xbf16>, vector<32x32xbf16>, vector<8x32xf32> -> vector<8x32xf32>
    %c0_37 = arith.constant 0 : index
    %c0_38 = arith.constant 0 : index
    %96 = vector.load %arg9[%c0_37, %c0_38] : memref<1x32xf32, #tpu.memory_space<vmem>>, vector<1x32xf32>
    %97 = vector.broadcast %96 : vector<1x32xf32> to vector<8x32xf32>
    %98 = arith.addf %95, %97 : vector<8x32xf32>
    %99 = vector.shape_cast %98 : vector<8x32xf32> to vector<1x8x32xf32>
    %c0_39 = arith.constant 0 : index
    %c0_40 = arith.constant 0 : index
    %c0_41 = arith.constant 0 : index
    %100 = vector.load %arg10[%c0_39, %c0_40, %c0_41] : memref<1x8x32xf32, #tpu.memory_space<vmem>>, vector<1x8x32xf32>
    tpu.vector_store %arg10[%c0_39, %c0_40, %c0_41], %99 {strides = array<i32>} : memref<1x8x32xf32, #tpu.memory_space<vmem>>, vector<1x8x32xf32>,
    return
  }
  func.func @transform_0(%arg0: i32) -> (i32, i32, i32) {
    %c0_i32 = arith.constant 0 : i32
    %c0_i32_0 = arith.constant 0 : i32
    %c0_i32_1 = arith.constant 0 : i32
    return %arg0, %c0_i32, %c0_i32_0 : i32, i32, i32
  }
  func.func @transform_1(%arg0: i32) -> (i32, i32, i32) {
    %c0_i32 = arith.constant 0 : i32
    %c0_i32_0 = arith.constant 0 : i32
    %c0_i32_1 = arith.constant 0 : i32
    return %arg0, %c0_i32, %c0_i32_0 : i32, i32, i32
  }
  func.func @transform_2(%arg0: i32) -> (i32, i32, i32) {
    %c0_i32 = arith.constant 0 : i32
    %c0_i32_0 = arith.constant 0 : i32
    %c0_i32_1 = arith.constant 0 : i32
    return %arg0, %c0_i32, %c0_i32_0 : i32, i32, i32
  }
  func.func @transform_3(%arg0: i32) -> (i32, i32) {
    %c0_i32 = arith.constant 0 : i32
    %c0_i32_0 = arith.constant 0 : i32
    %c0_i32_1 = arith.constant 0 : i32
    return %c0_i32, %c0_i32_0 : i32, i32
  }
  func.func @transform_4(%arg0: i32) -> (i32, i32) {
    %c0_i32 = arith.constant 0 : i32
    %c0_i32_0 = arith.constant 0 : i32
    %c0_i32_1 = arith.constant 0 : i32
    return %c0_i32, %c0_i32_0 : i32, i32
  }
  func.func @transform_5(%arg0: i32) -> (i32, i32) {
    %c0_i32 = arith.constant 0 : i32
    %c0_i32_0 = arith.constant 0 : i32
    %c0_i32_1 = arith.constant 0 : i32
    return %c0_i32, %c0_i32_0 : i32, i32
  }
  func.func @transform_6(%arg0: i32) -> (i32, i32) {
    %c0_i32 = arith.constant 0 : i32
    %c0_i32_0 = arith.constant 0 : i32
    %c0_i32_1 = arith.constant 0 : i32
    return %c0_i32, %c0_i32_0 : i32, i32
  }
  func.func @transform_7(%arg0: i32) -> (i32, i32) {
    %c0_i32 = arith.constant 0 : i32
    %c0_i32_0 = arith.constant 0 : i32
    %c0_i32_1 = arith.constant 0 : i32
    return %c0_i32, %c0_i32_0 : i32, i32
  }
  func.func @transform_8(%arg0: i32) -> (i32, i32) {
    %c0_i32 = arith.constant 0 : i32
    %c0_i32_0 = arith.constant 0 : i32
    %c0_i32_1 = arith.constant 0 : i32
    return %c0_i32, %c0_i32_0 : i32, i32
  }
  func.func @transform_9(%arg0: i32) -> (i32, i32, i32) {
    %c0_i32 = arith.constant 0 : i32
    %c0_i32_0 = arith.constant 0 : i32
    %c0_i32_1 = arith.constant 0 : i32
    return %arg0, %c0_i32, %c0_i32_0 : i32, i32, i32
  }
}

module attributes {stable_mosaic.version = 11 : i64} {
  func.func @_cross_attn_kernel(%arg0: i32, %arg1: memref<1x8x32xf32, #tpu.memory_space<vmem>>, %arg2: memref<1x8x32xf32, #tpu.memory_space<vmem>>, %arg3: memref<1x8x32xf32, #tpu.memory_space<vmem>>, %arg4: memref<32x32xbf16, #tpu.memory_space<vmem>>, %arg5: memref<1x32xf32, #tpu.memory_space<vmem>>, %arg6: memref<32x32xbf16, #tpu.memory_space<vmem>>, %arg7: memref<32x32xbf16, #tpu.memory_space<vmem>>, %arg8: memref<32x32xbf16, #tpu.memory_space<vmem>>, %arg9: memref<1x32xf32, #tpu.memory_space<vmem>>, %arg10: memref<1x8x32xf32, #tpu.memory_space<vmem>>) attributes {dimension_semantics = [#tpu.dimension_semantics<parallel>], iteration_bounds = array<i64: 2>, scalar_prefetch = 0 : i64, scratch_operands = 0 : i64, tpu.core_type = #tpu.core_type<tc>, window_params = [{transform_indices = @transform_0, window_bounds = array<i64: 1, 8, 32>}, {transform_indices = @transform_1, window_bounds = array<i64: 1, 8, 32>}, {transform_indices = @transform_2, window_bounds = array<i64: 1, 8, 32>}, {pipeline_mode = #tpu.pipeline_mode<synchronous>, transform_indices = @transform_3, window_bounds = array<i64: 32, 32>}, {pipeline_mode = #tpu.pipeline_mode<synchronous>, transform_indices = @transform_4, window_bounds = array<i64: 1, 32>}, {pipeline_mode = #tpu.pipeline_mode<synchronous>, transform_indices = @transform_5, window_bounds = array<i64: 32, 32>}, {pipeline_mode = #tpu.pipeline_mode<synchronous>, transform_indices = @transform_6, window_bounds = array<i64: 32, 32>}, {pipeline_mode = #tpu.pipeline_mode<synchronous>, transform_indices = @transform_7, window_bounds = array<i64: 32, 32>}, {pipeline_mode = #tpu.pipeline_mode<synchronous>, transform_indices = @transform_8, window_bounds = array<i64: 1, 32>}, {transform_indices = @transform_9, window_bounds = array<i64: 1, 8, 32>}]} {
    %c0 = arith.constant 0 : index
    %c0_0 = arith.constant 0 : index
    %c0_1 = arith.constant 0 : index
    %0 = vector.load %arg1[%c0, %c0_0, %c0_1] : memref<1x8x32xf32, #tpu.memory_space<vmem>>, vector<1x8x32xf32>
    %1 = vector.shape_cast %0 : vector<1x8x32xf32> to vector<8x32xf32>
    %2 = arith.truncf %1 : vector<8x32xf32> to vector<8x32xbf16>
    %c0_2 = arith.constant 0 : index
    %c0_3 = arith.constant 0 : index
    %c0_4 = arith.constant 0 : index
    %3 = vector.load %arg2[%c0_2, %c0_3, %c0_4] : memref<1x8x32xf32, #tpu.memory_space<vmem>>, vector<1x8x32xf32>
    %4 = vector.shape_cast %3 : vector<1x8x32xf32> to vector<8x32xf32>
    %5 = arith.truncf %4 : vector<8x32xf32> to vector<8x32xbf16>
    %c0_5 = arith.constant 0 : index
    %c0_6 = arith.constant 0 : index
    %c0_7 = arith.constant 0 : index
    %6 = vector.load %arg3[%c0_5, %c0_6, %c0_7] : memref<1x8x32xf32, #tpu.memory_space<vmem>>, vector<1x8x32xf32>
    %7 = vector.shape_cast %6 : vector<1x8x32xf32> to vector<8x32xf32>
    %8 = arith.truncf %7 : vector<8x32xf32> to vector<8x32xbf16>
    %c0_8 = arith.constant 0 : index
    %c0_9 = arith.constant 0 : index
    %9 = vector.load %arg4[%c0_8, %c0_9] : memref<32x32xbf16, #tpu.memory_space<vmem>>, vector<32x32xbf16>
    %cst = arith.constant dense<0.000000e+00> : vector<8x32xf32>
    %10 = tpu.matmul %2, %9, %cst {dimension_numbers = #tpu.dot_dimension_numbers<[1], [0], [0], [1], [0, 0, 1, 1], [], []>} : vector<8x32xbf16>, vector<32x32xbf16>, vector<8x32xf32> -> vector<8x32xf32>
    %c0_10 = arith.constant 0 : index
    %c0_11 = arith.constant 0 : index
    %11 = vector.load %arg5[%c0_10, %c0_11] : memref<1x32xf32, #tpu.memory_space<vmem>>, vector<1x32xf32>
    %12 = vector.broadcast %11 : vector<1x32xf32> to vector<8x32xf32>
    %13 = arith.addf %10, %12 : vector<8x32xf32>
    %14 = arith.truncf %13 : vector<8x32xf32> to vector<8x32xbf16>
    %15 = vector.shape_cast %14 : vector<8x32xbf16> to vector<1x8x32xbf16>
    %c0_12 = arith.constant 0 : index
    %c0_13 = arith.constant 0 : index
    %16 = vector.load %arg6[%c0_12, %c0_13] : memref<32x32xbf16, #tpu.memory_space<vmem>>, vector<32x32xbf16>
    %cst_14 = arith.constant dense<0.000000e+00> : vector<8x32xf32>
    %17 = tpu.matmul %5, %16, %cst_14 {dimension_numbers = #tpu.dot_dimension_numbers<[1], [0], [0], [1], [0, 0, 1, 1], [], []>} : vector<8x32xbf16>, vector<32x32xbf16>, vector<8x32xf32> -> vector<8x32xf32>
    %18 = arith.truncf %17 : vector<8x32xf32> to vector<8x32xbf16>
    %19 = vector.shape_cast %18 : vector<8x32xbf16> to vector<1x8x32xbf16>
    %c0_15 = arith.constant 0 : index
    %c0_16 = arith.constant 0 : index
    %20 = vector.load %arg7[%c0_15, %c0_16] : memref<32x32xbf16, #tpu.memory_space<vmem>>, vector<32x32xbf16>
    %cst_17 = arith.constant dense<0.000000e+00> : vector<8x32xf32>
    %21 = tpu.matmul %8, %20, %cst_17 {dimension_numbers = #tpu.dot_dimension_numbers<[1], [0], [0], [1], [0, 0, 1, 1], [], []>} : vector<8x32xbf16>, vector<32x32xbf16>, vector<8x32xf32> -> vector<8x32xf32>
    %22 = arith.truncf %21 : vector<8x32xf32> to vector<8x32xbf16>
    %23 = vector.shape_cast %22 : vector<8x32xbf16> to vector<1x8x32xbf16>
    %24 = vector.extract_strided_slice %15 {offsets = [0, 0, 0], sizes = [1, 8, 8], strides = [1, 1, 1]} : vector<1x8x32xbf16> to vector<1x8x8xbf16>
    %25 = vector.extract_strided_slice %19 {offsets = [0, 0, 0], sizes = [1, 8, 8], strides = [1, 1, 1]} : vector<1x8x32xbf16> to vector<1x8x8xbf16>
    %26 = vector.extract_strided_slice %23 {offsets = [0, 0, 0], sizes = [1, 8, 8], strides = [1, 1, 1]} : vector<1x8x32xbf16> to vector<1x8x8xbf16>
    "tpu.trace_start"() <{level = 10 : i32, message = "bqd,bkd->bqk"}> : () -> ()
    %cst_18 = arith.constant dense<0.000000e+00> : vector<1x8x8xf32>
    %27 = tpu.matmul %24, %25, %cst_18 {dimension_numbers = #tpu.dot_dimension_numbers<[2], [2], [1], [1], [0, 0, 0, 1, 1, 1], [0], [0]>} : vector<1x8x8xbf16>, vector<1x8x8xbf16>, vector<1x8x8xf32> -> vector<1x8x8xf32>
    "tpu.trace_stop"() : () -> ()
    %cst_19 = arith.constant dense<0xFF800000> : vector<1x8xf32>
    %28 = vector.multi_reduction <maximumf>, %27, %cst_19 [2] : vector<1x8x8xf32> to vector<1x8xf32>
    %29 = vector.shape_cast %28 : vector<1x8xf32> to vector<1x8x1xf32>
    %30 = vector.broadcast %29 : vector<1x8x1xf32> to vector<1x8x8xf32>
    %31 = arith.subf %27, %30 : vector<1x8x8xf32>
    %32 = math.exp %31 : vector<1x8x8xf32>
    %cst_20 = arith.constant dense<0.000000e+00> : vector<1x8xf32>
    %33 = vector.multi_reduction <add>, %32, %cst_20 [2] : vector<1x8x8xf32> to vector<1x8xf32>
    %34 = vector.shape_cast %33 : vector<1x8xf32> to vector<1x8x1xf32>
    %35 = tpu.reciprocal %34 {approx = true} : vector<1x8x1xf32> -> vector<1x8x1xf32>
    %36 = vector.broadcast %35 : vector<1x8x1xf32> to vector<1x8x8xf32>
    %37 = arith.mulf %32, %36 : vector<1x8x8xf32>
    %38 = arith.truncf %37 : vector<1x8x8xf32> to vector<1x8x8xbf16>
    "tpu.trace_start"() <{level = 10 : i32, message = "bqk,bkd->bqd"}> : () -> ()
    %cst_21 = arith.constant dense<0.000000e+00> : vector<1x8x8xf32>
    %39 = tpu.matmul %38, %26, %cst_21 {dimension_numbers = #tpu.dot_dimension_numbers<[2], [1], [1], [2], [0, 0, 0, 1, 1, 2], [0], [0]>} : vector<1x8x8xbf16>, vector<1x8x8xbf16>, vector<1x8x8xf32> -> vector<1x8x8xf32>
    "tpu.trace_stop"() : () -> ()
    %40 = arith.truncf %39 : vector<1x8x8xf32> to vector<1x8x8xbf16>
    %41 = vector.extract_strided_slice %15 {offsets = [0, 0, 8], sizes = [1, 8, 8], strides = [1, 1, 1]} : vector<1x8x32xbf16> to vector<1x8x8xbf16>
    %42 = vector.extract_strided_slice %19 {offsets = [0, 0, 8], sizes = [1, 8, 8], strides = [1, 1, 1]} : vector<1x8x32xbf16> to vector<1x8x8xbf16>
    %43 = vector.extract_strided_slice %23 {offsets = [0, 0, 8], sizes = [1, 8, 8], strides = [1, 1, 1]} : vector<1x8x32xbf16> to vector<1x8x8xbf16>
    "tpu.trace_start"() <{level = 10 : i32, message = "bqd,bkd->bqk"}> : () -> ()
    %cst_22 = arith.constant dense<0.000000e+00> : vector<1x8x8xf32>
    %44 = tpu.matmul %41, %42, %cst_22 {dimension_numbers = #tpu.dot_dimension_numbers<[2], [2], [1], [1], [0, 0, 0, 1, 1, 1], [0], [0]>} : vector<1x8x8xbf16>, vector<1x8x8xbf16>, vector<1x8x8xf32> -> vector<1x8x8xf32>
    "tpu.trace_stop"() : () -> ()
    %cst_23 = arith.constant dense<0xFF800000> : vector<1x8xf32>
    %45 = vector.multi_reduction <maximumf>, %44, %cst_23 [2] : vector<1x8x8xf32> to vector<1x8xf32>
    %46 = vector.shape_cast %45 : vector<1x8xf32> to vector<1x8x1xf32>
    %47 = vector.broadcast %46 : vector<1x8x1xf32> to vector<1x8x8xf32>
    %48 = arith.subf %44, %47 : vector<1x8x8xf32>
    %49 = math.exp %48 : vector<1x8x8xf32>
    %cst_24 = arith.constant dense<0.000000e+00> : vector<1x8xf32>
    %50 = vector.multi_reduction <add>, %49, %cst_24 [2] : vector<1x8x8xf32> to vector<1x8xf32>
    %51 = vector.shape_cast %50 : vector<1x8xf32> to vector<1x8x1xf32>
    %52 = tpu.reciprocal %51 {approx = true} : vector<1x8x1xf32> -> vector<1x8x1xf32>
    %53 = vector.broadcast %52 : vector<1x8x1xf32> to vector<1x8x8xf32>
    %54 = arith.mulf %49, %53 : vector<1x8x8xf32>
    %55 = arith.truncf %54 : vector<1x8x8xf32> to vector<1x8x8xbf16>
    "tpu.trace_start"() <{level = 10 : i32, message = "bqk,bkd->bqd"}> : () -> ()
    %cst_25 = arith.constant dense<0.000000e+00> : vector<1x8x8xf32>
    %56 = tpu.matmul %55, %43, %cst_25 {dimension_numbers = #tpu.dot_dimension_numbers<[2], [1], [1], [2], [0, 0, 0, 1, 1, 2], [0], [0]>} : vector<1x8x8xbf16>, vector<1x8x8xbf16>, vector<1x8x8xf32> -> vector<1x8x8xf32>
    "tpu.trace_stop"() : () -> ()
    %57 = arith.truncf %56 : vector<1x8x8xf32> to vector<1x8x8xbf16>
    %58 = vector.extract_strided_slice %15 {offsets = [0, 0, 16], sizes = [1, 8, 8], strides = [1, 1, 1]} : vector<1x8x32xbf16> to vector<1x8x8xbf16>
    %59 = vector.extract_strided_slice %19 {offsets = [0, 0, 16], sizes = [1, 8, 8], strides = [1, 1, 1]} : vector<1x8x32xbf16> to vector<1x8x8xbf16>
    %60 = vector.extract_strided_slice %23 {offsets = [0, 0, 16], sizes = [1, 8, 8], strides = [1, 1, 1]} : vector<1x8x32xbf16> to vector<1x8x8xbf16>
    "tpu.trace_start"() <{level = 10 : i32, message = "bqd,bkd->bqk"}> : () -> ()
    %cst_26 = arith.constant dense<0.000000e+00> : vector<1x8x8xf32>
    %61 = tpu.matmul %58, %59, %cst_26 {dimension_numbers = #tpu.dot_dimension_numbers<[2], [2], [1], [1], [0, 0, 0, 1, 1, 1], [0], [0]>} : vector<1x8x8xbf16>, vector<1x8x8xbf16>, vector<1x8x8xf32> -> vector<1x8x8xf32>
    "tpu.trace_stop"() : () -> ()
    %cst_27 = arith.constant dense<0xFF800000> : vector<1x8xf32>
    %62 = vector.multi_reduction <maximumf>, %61, %cst_27 [2] : vector<1x8x8xf32> to vector<1x8xf32>
    %63 = vector.shape_cast %62 : vector<1x8xf32> to vector<1x8x1xf32>
    %64 = vector.broadcast %63 : vector<1x8x1xf32> to vector<1x8x8xf32>
    %65 = arith.subf %61, %64 : vector<1x8x8xf32>
    %66 = math.exp %65 : vector<1x8x8xf32>
    %cst_28 = arith.constant dense<0.000000e+00> : vector<1x8xf32>
    %67 = vector.multi_reduction <add>, %66, %cst_28 [2] : vector<1x8x8xf32> to vector<1x8xf32>
    %68 = vector.shape_cast %67 : vector<1x8xf32> to vector<1x8x1xf32>
    %69 = tpu.reciprocal %68 {approx = true} : vector<1x8x1xf32> -> vector<1x8x1xf32>
    %70 = vector.broadcast %69 : vector<1x8x1xf32> to vector<1x8x8xf32>
    %71 = arith.mulf %66, %70 : vector<1x8x8xf32>
    %72 = arith.truncf %71 : vector<1x8x8xf32> to vector<1x8x8xbf16>
    "tpu.trace_start"() <{level = 10 : i32, message = "bqk,bkd->bqd"}> : () -> ()
    %cst_29 = arith.constant dense<0.000000e+00> : vector<1x8x8xf32>
    %73 = tpu.matmul %72, %60, %cst_29 {dimension_numbers = #tpu.dot_dimension_numbers<[2], [1], [1], [2], [0, 0, 0, 1, 1, 2], [0], [0]>} : vector<1x8x8xbf16>, vector<1x8x8xbf16>, vector<1x8x8xf32> -> vector<1x8x8xf32>
    "tpu.trace_stop"() : () -> ()
    %74 = arith.truncf %73 : vector<1x8x8xf32> to vector<1x8x8xbf16>
    %75 = vector.extract_strided_slice %15 {offsets = [0, 0, 24], sizes = [1, 8, 8], strides = [1, 1, 1]} : vector<1x8x32xbf16> to vector<1x8x8xbf16>
    %76 = vector.extract_strided_slice %19 {offsets = [0, 0, 24], sizes = [1, 8, 8], strides = [1, 1, 1]} : vector<1x8x32xbf16> to vector<1x8x8xbf16>
    %77 = vector.extract_strided_slice %23 {offsets = [0, 0, 24], sizes = [1, 8, 8], strides = [1, 1, 1]} : vector<1x8x32xbf16> to vector<1x8x8xbf16>
    "tpu.trace_start"() <{level = 10 : i32, message = "bqd,bkd->bqk"}> : () -> ()
    %cst_30 = arith.constant dense<0.000000e+00> : vector<1x8x8xf32>
    %78 = tpu.matmul %75, %76, %cst_30 {dimension_numbers = #tpu.dot_dimension_numbers<[2], [2], [1], [1], [0, 0, 0, 1, 1, 1], [0], [0]>} : vector<1x8x8xbf16>, vector<1x8x8xbf16>, vector<1x8x8xf32> -> vector<1x8x8xf32>
    "tpu.trace_stop"() : () -> ()
    %cst_31 = arith.constant dense<0xFF800000> : vector<1x8xf32>
    %79 = vector.multi_reduction <maximumf>, %78, %cst_31 [2] : vector<1x8x8xf32> to vector<1x8xf32>
    %80 = vector.shape_cast %79 : vector<1x8xf32> to vector<1x8x1xf32>
    %81 = vector.broadcast %80 : vector<1x8x1xf32> to vector<1x8x8xf32>
    %82 = arith.subf %78, %81 : vector<1x8x8xf32>
    %83 = math.exp %82 : vector<1x8x8xf32>
    %cst_32 = arith.constant dense<0.000000e+00> : vector<1x8xf32>
    %84 = vector.multi_reduction <add>, %83, %cst_32 [2] : vector<1x8x8xf32> to vector<1x8xf32>
    %85 = vector.shape_cast %84 : vector<1x8xf32> to vector<1x8x1xf32>
    %86 = tpu.reciprocal %85 {approx = true} : vector<1x8x1xf32> -> vector<1x8x1xf32>
    %87 = vector.broadcast %86 : vector<1x8x1xf32> to vector<1x8x8xf32>
    %88 = arith.mulf %83, %87 : vector<1x8x8xf32>
    %89 = arith.truncf %88 : vector<1x8x8xf32> to vector<1x8x8xbf16>
    "tpu.trace_start"() <{level = 10 : i32, message = "bqk,bkd->bqd"}> : () -> ()
    %cst_33 = arith.constant dense<0.000000e+00> : vector<1x8x8xf32>
    %90 = tpu.matmul %89, %77, %cst_33 {dimension_numbers = #tpu.dot_dimension_numbers<[2], [1], [1], [2], [0, 0, 0, 1, 1, 2], [0], [0]>} : vector<1x8x8xbf16>, vector<1x8x8xbf16>, vector<1x8x8xf32> -> vector<1x8x8xf32>
    "tpu.trace_stop"() : () -> ()
    %91 = arith.truncf %90 : vector<1x8x8xf32> to vector<1x8x8xbf16>
    %92 = tpu.concatenate %40, %57, %74, %91 in 2 : vector<1x8x8xbf16>, vector<1x8x8xbf16>, vector<1x8x8xbf16>, vector<1x8x8xbf16> -> vector<1x8x32xbf16>
    %93 = vector.shape_cast %92 : vector<1x8x32xbf16> to vector<8x32xbf16>
    %c0_34 = arith.constant 0 : index
    %c0_35 = arith.constant 0 : index
    %94 = vector.load %arg8[%c0_34, %c0_35] : memref<32x32xbf16, #tpu.memory_space<vmem>>, vector<32x32xbf16>
    %cst_36 = arith.constant dense<0.000000e+00> : vector<8x32xf32>
    %95 = tpu.matmul %93, %94, %cst_36 {dimension_numbers = #tpu.dot_dimension_numbers<[1], [0], [0], [1], [0, 0, 1, 1], [], []>} : vector<8x32xbf16>, vector<32x32xbf16>, vector<8x32xf32> -> vector<8x32xf32>
    %c0_37 = arith.constant 0 : index
    %c0_38 = arith.constant 0 : index
    %96 = vector.load %arg9[%c0_37, %c0_38] : memref<1x32xf32, #tpu.memory_space<vmem>>, vector<1x32xf32>
    %97 = vector.broadcast %96 : vector<1x32xf32> to vector<8x32xf32>
    %98 = arith.addf %95, %97 : vector<8x32xf32>
    %99 = vector.shape_cast %98 : vector<8x32xf32> to vector<1x8x32xf32>
    %c0_39 = arith.constant 0 : index
    %c0_40 = arith.constant 0 : index
    %c0_41 = arith.constant 0 : index
    %100 = vector.load %arg10[%c0_39, %c0_40, %c0_41] : memref<1x8x32xf32, #tpu.memory_space<vmem>>, vector<1x8x32xf32>
    tpu.vector_store %arg10[%c0_39, %c0_40, %c0_41], %99 {strides = array<i32>} : memref<1x8x32xf32, #tpu.memory_space<vmem>>, vector<1x8x32xf32>,
    return
  }
  func.func @transform_0(%arg0: i32) -> (i32, i32, i32) {
    %c0_i32 = arith.constant 0 : i32
    %c0_i32_0 = arith.constant 0 : i32
    %c0_i32_1 = arith.constant 0 : i32
    return %arg0, %c0_i32, %c0_i32_0 : i32, i32, i32
  }
  func.func @transform_1(%arg0: i32) -> (i32, i32, i32) {
    %c0_i32 = arith.constant 0 : i32
    %c0_i32_0 = arith.constant 0 : i32
    %c0_i32_1 = arith.constant 0 : i32
    return %arg0, %c0_i32, %c0_i32_0 : i32, i32, i32
  }
  func.func @transform_2(%arg0: i32) -> (i32, i32, i32) {
    %c0_i32 = arith.constant 0 : i32
    %c0_i32_0 = arith.constant 0 : i32
    %c0_i32_1 = arith.constant 0 : i32
    return %arg0, %c0_i32, %c0_i32_0 : i32, i32, i32
  }
  func.func @transform_3(%arg0: i32) -> (i32, i32) {
    %c0_i32 = arith.constant 0 : i32
    %c0_i32_0 = arith.constant 0 : i32
    %c0_i32_1 = arith.constant 0 : i32
    return %c0_i32, %c0_i32_0 : i32, i32
  }
  func.func @transform_4(%arg0: i32) -> (i32, i32) {
    %c0_i32 = arith.constant 0 : i32
    %c0_i32_0 = arith.constant 0 : i32
    %c0_i32_1 = arith.constant 0 : i32
    return %c0_i32, %c0_i32_0 : i32, i32
  }
  func.func @transform_5(%arg0: i32) -> (i32, i32) {
    %c0_i32 = arith.constant 0 : i32
    %c0_i32_0 = arith.constant 0 : i32
    %c0_i32_1 = arith.constant 0 : i32
    return %c0_i32, %c0_i32_0 : i32, i32
  }
  func.func @transform_6(%arg0: i32) -> (i32, i32) {
    %c0_i32 = arith.constant 0 : i32
    %c0_i32_0 = arith.constant 0 : i32
    %c0_i32_1 = arith.constant 0 : i32
    return %c0_i32, %c0_i32_0 : i32, i32
  }
  func.func @transform_7(%arg0: i32) -> (i32, i32) {
    %c0_i32 = arith.constant 0 : i32
    %c0_i32_0 = arith.constant 0 : i32
    %c0_i32_1 = arith.constant 0 : i32
    return %c0_i32, %c0_i32_0 : i32, i32
  }
  func.func @transform_8(%arg0: i32) -> (i32, i32) {
    %c0_i32 = arith.constant 0 : i32
    %c0_i32_0 = arith.constant 0 : i32
    %c0_i32_1 = arith.constant 0 : i32
    return %c0_i32, %c0_i32_0 : i32, i32
  }
  func.func @transform_9(%arg0: i32) -> (i32, i32, i32) {
    %c0_i32 = arith.constant 0 : i32
    %c0_i32_0 = arith.constant 0 : i32
    %c0_i32_1 = arith.constant 0 : i32
    return %arg0, %c0_i32, %c0_i32_0 : i32, i32, i32
  }
}

</mosaic_0001>

<llo_original>
// kernel: tpu_custom_call.1
$region0: #{tpu_custom_call.1}
  #allocation0 [shape = 'u32[]', space=smem, size = 0x4, offset = 0x4, fixed_abs, tag = 'smem constant byte address 0x4 - core index']
  #allocation1 [shape = 'u32[72,128]{1,0:T(1,128)}', space=vmem, size = 0x9000, scoped, tag = 'internal scratch']
  %s0 = inlined_call_operand.hbm [shape: f32[2,8,32], index: 0, kind: input, shape index: {}]
  %s1 = inlined_call_operand.hbm [shape: f32[2,8,32], index: 1, kind: input, shape index: {}]
  %s2 = inlined_call_operand.hbm [shape: f32[2,8,32], index: 2, kind: input, shape index: {}]
  %s3 = inlined_call_operand.hbm [shape: bf16[32,32], index: 3, kind: input, shape index: {}]
  %s4 = inlined_call_operand.vmem [shape: f32[1,32], index: 4, kind: input, shape index: {}]
  %s5 = inlined_call_operand.hbm [shape: bf16[32,32], index: 5, kind: input, shape index: {}]
  %s6 = inlined_call_operand.hbm [shape: bf16[32,32], index: 6, kind: input, shape index: {}]
  %s7 = inlined_call_operand.hbm [shape: bf16[32,32], index: 7, kind: input, shape index: {}]
  %s8 = inlined_call_operand.vmem [shape: f32[1,32], index: 8, kind: input, shape index: {}]
  %s9 = inlined_call_operand.hbm [shape: f32[2,8,32], index: 9, kind: output, shape index: {}]
  %s10 = sld [smem:[#allocation0]]
  $region97: #{tpu_custom_call.1} parent=0
    _
  %s12 = ssub.s32 1, %s10
  %s13 = scalar_select 0, %s12, %s10
  $region1: #{tpu_custom_call.1} parent=0
    #allocation2 [shape = 'u8[8192]{0}', space=vmem, size = 0x2000, scoped, tag = 'input window, operand 0']
    #allocation3 [shape = 's32[2]{0}', space=sflag, size = 0x8, scoped, tag = 'scoped memory for tpu_custom_call.1']
    #allocation4 [shape = 's32[2]{0}', space=sflag, size = 0x8, scoped, tag = 'scoped memory for tpu_custom_call.1']
    #allocation5 [shape = 'u8[8192]{0}', space=vmem, size = 0x2000, scoped, tag = 'input window, operand 1']
    #allocation6 [shape = 's32[2]{0}', space=sflag, size = 0x8, scoped, tag = 'scoped memory for tpu_custom_call.1']
    #allocation7 [shape = 'u8[8192]{0}', space=vmem, size = 0x2000, scoped, tag = 'input window, operand 2']
    #allocation8 [shape = 'u8[8192]{0}', space=vmem, size = 0x2000, scoped, tag = 'input window, operand 3, single buffered']
    #allocation9 [shape = 's32[1]{0}', space=sflag, size = 0x4, scoped, tag = 'scoped memory for tpu_custom_call.1']
    #allocation10 [shape = 'u8[8192]{0}', space=vmem, size = 0x2000, scoped, tag = 'input window, operand 5, single buffered']
    #allocation11 [shape = 'u8[8192]{0}', space=vmem, size = 0x2000, scoped, tag = 'input window, operand 6, single buffered']
    #allocation12 [shape = 's32[1]{0}', space=sflag, size = 0x4, scoped, tag = 'scoped memory for tpu_custom_call.1']
    #allocation13 [shape = 'u8[8192]{0}', space=vmem, size = 0x2000, scoped, tag = 'input window, operand 7, single buffered']
    #allocation14 [shape = 'u8[8192]{0}', space=vmem, size = 0x2000, scoped, tag = 'output window, operand 0']
    %14 = vsyncpa [#allocation3], 0
    %s15 = scalar_lea.sflag [#allocation3], 1
    %16 = vsyncpa %s15, 0
    %17 = vsyncpa [#allocation6], 0
    %s18 = scalar_lea.sflag [#allocation6], 1
    %19 = vsyncpa %s18, 0
    %20 = vsyncpa [#allocation9], 0
    %21 = vsyncpa [#allocation12], 0
    %22 = vsyncpa [#allocation4], 0
    %s23 = scalar_lea.sflag [#allocation4], 1
    %24 = vsyncpa %s23, 0
    loop: start=0, step=1, limit=4
    $region2: #{tpu_custom_call.1} parent=1 // loop_pre_header
      _
    $region3: #{tpu_custom_call.1} parent=1 // loop_header
      %s26 = sphi 0, %s30
      %p27 = scmp.ge.s32.totalorder %s26, 4
      %s36 = sphi 0, %s38
      %s39 = sphi 0, %s36
      %s40 = sphi 0, %s39
      %s56 = sphi 0, %s40
      %s62 = sphi 0, %s64
      %s65 = sphi 0, %s62
      %s66 = sphi 0, %s65
      %s82 = sphi 0, %s66
      %s88 = sphi 0, %s90
      %s91 = sphi 0, %s88
      %s92 = sphi 0, %s91
      %s108 = sphi 0, %s92
      %s112 = sphi 0, %s112
      %s114 = sphi 0, %s112
      %s115 = sphi 0, %s114
      %s129 = sphi 0, %s115
      %s133 = sphi 0, %s133
      %s135 = sphi 0, %s133
      %s136 = sphi 0, %s135
      %s150 = sphi 0, %s136
      %s154 = sphi 0, %s154
      %s156 = sphi 0, %s154
      %s157 = sphi 0, %s156
      %s171 = sphi 0, %s157
      %s175 = sphi 0, %s175
      %s177 = sphi 0, %s175
      %s178 = sphi 0, %s177
      %s192 = sphi 0, %s178
      %s196 = sphi 0, %s196
      %s198 = sphi 0, %s196
      %s199 = sphi 0, %s198
      %s213 = sphi 0, %s199
      %s217 = sphi 0, %s217
      %s219 = sphi 0, %s217
      %s220 = sphi 0, %s219
      %s234 = sphi 0, %s220
      %s240 = sphi 0, %s242
      %s243 = sphi 0, %s240
      %s244 = sphi 0, %s243
      %s260 = sphi 0, %s244
    $region4: #{tpu_custom_call.1} parent=1 // loop_header_branch
      %29 = sbr.rel (%p27) target = $region8
    $region5: #{tpu_custom_call.1} parent=1 // loop_body
      %s31 = ssub.s32 %s26, 1
      %s32 = ssub.s32 %s26, 2
      %s33 = sadd.s32 %s26, 1
      %s34 = ssub.s32 %s26, %s33
      %p35 = scmp.eq.s32.totalorder %s34, 0
      %s37 = sadd.s32 %s36, 1
      %s38 = scalar_select %p35, %s36, %s37
      %p41 = pneg %p35
      %p42 = scmp.eq.s32.totalorder %s26, 1
      %p43 = por %p41, %p42
      %p44 = scmp.ne.s32.totalorder %s36, %s39
      %p45 = scmp.eq.s32.totalorder %s26, 0
      %p46 = por %p44, %p45
      %p47 = scmp.ne.s32.totalorder %s36, %s39
      %p48 = scmp.eq.s32.totalorder %s31, 1
      %p49 = por %p47, %p48
      %p50 = scmp.ne.s32.totalorder %s39, %s40
      %p51 = scmp.eq.s32.totalorder %s31, 0
      %p52 = por %p50, %p51
      %p53 = scmp.ne.s32.totalorder %s39, %s40
      %p54 = scmp.eq.s32.totalorder %s32, 1
      %p55 = por %p53, %p54
      %p57 = scmp.ne.s32.totalorder %s40, %s56
      %p58 = scmp.eq.s32.totalorder %s32, 0
      %p59 = por %p57, %p58
      %s60 = ssub.s32 %s26, %s33
      %p61 = scmp.eq.s32.totalorder %s60, 0
      %s63 = sadd.s32 %s62, 1
      %s64 = scalar_select %p61, %s62, %s63
      %p67 = pneg %p61
      %p68 = scmp.eq.s32.totalorder %s26, 1
      %p69 = por %p67, %p68
      %p70 = scmp.ne.s32.totalorder %s62, %s65
      %p71 = scmp.eq.s32.totalorder %s26, 0
      %p72 = por %p70, %p71
      %p73 = scmp.ne.s32.totalorder %s62, %s65
      %p74 = scmp.eq.s32.totalorder %s31, 1
      %p75 = por %p73, %p74
      %p76 = scmp.ne.s32.totalorder %s65, %s66
      %p77 = scmp.eq.s32.totalorder %s31, 0
      %p78 = por %p76, %p77
      %p79 = scmp.ne.s32.totalorder %s65, %s66
      %p80 = scmp.eq.s32.totalorder %s32, 1
      %p81 = por %p79, %p80
      %p83 = scmp.ne.s32.totalorder %s66, %s82
      %p84 = scmp.eq.s32.totalorder %s32, 0
      %p85 = por %p83, %p84
      %s86 = ssub.s32 %s26, %s33
      %p87 = scmp.eq.s32.totalorder %s86, 0
      %s89 = sadd.s32 %s88, 1
      %s90 = scalar_select %p87, %s88, %s89
      %p93 = pneg %p87
      %p94 = scmp.eq.s32.totalorder %s26, 1
      %p95 = por %p93, %p94
      %p96 = scmp.ne.s32.totalorder %s88, %s91
      %p97 = scmp.eq.s32.totalorder %s26, 0
      %p98 = por %p96, %p97
      %p99 = scmp.ne.s32.totalorder %s88, %s91
      %p100 = scmp.eq.s32.totalorder %s31, 1
      %p101 = por %p99, %p100
      %p102 = scmp.ne.s32.totalorder %s91, %s92
      %p103 = scmp.eq.s32.totalorder %s31, 0
      %p104 = por %p102, %p103
      %p105 = scmp.ne.s32.totalorder %s91, %s92
      %p106 = scmp.eq.s32.totalorder %s32, 1
      %p107 = por %p105, %p106
      %p109 = scmp.ne.s32.totalorder %s92, %s108
      %p110 = scmp.eq.s32.totalorder %s32, 0
      %p111 = por %p109, %p110
      %s113 = sadd.s32 %s112, 1
      %p116 = scmp.eq.s32.totalorder %s26, 1
      %p117 = scmp.ne.s32.totalorder %s112, %s114
      %p118 = scmp.eq.s32.totalorder %s26, 0
      %p119 = por %p117, %p118
      %p120 = scmp.ne.s32.totalorder %s112, %s114
      %p121 = scmp.eq.s32.totalorder %s31, 1
      %p122 = por %p120, %p121
      %p123 = scmp.ne.s32.totalorder %s114, %s115
      %p124 = scmp.eq.s32.totalorder %s31, 0
      %p125 = por %p123, %p124
      %p126 = scmp.ne.s32.totalorder %s114, %s115
      %p127 = scmp.eq.s32.totalorder %s32, 1
      %p128 = por %p126, %p127
      %p130 = scmp.ne.s32.totalorder %s115, %s129
      %p131 = scmp.eq.s32.totalorder %s32, 0
      %p132 = por %p130, %p131
      %s134 = sadd.s32 %s133, 1
      %p137 = scmp.eq.s32.totalorder %s26, 1
      %p138 = scmp.ne.s32.totalorder %s133, %s135
      %p139 = scmp.eq.s32.totalorder %s26, 0
      %p140 = por %p138, %p139
      %p141 = scmp.ne.s32.totalorder %s133, %s135
      %p142 = scmp.eq.s32.totalorder %s31, 1
      %p143 = por %p141, %p142
      %p144 = scmp.ne.s32.totalorder %s135, %s136
      %p145 = scmp.eq.s32.totalorder %s31, 0
      %p146 = por %p144, %p145
      %p147 = scmp.ne.s32.totalorder %s135, %s136
      %p148 = scmp.eq.s32.totalorder %s32, 1
      %p149 = por %p147, %p148
      %p151 = scmp.ne.s32.totalorder %s136, %s150
      %p152 = scmp.eq.s32.totalorder %s32, 0
      %p153 = por %p151, %p152
      %s155 = sadd.s32 %s154, 1
      %p158 = scmp.eq.s32.totalorder %s26, 1
      %p159 = scmp.ne.s32.totalorder %s154, %s156
      %p160 = scmp.eq.s32.totalorder %s26, 0
      %p161 = por %p159, %p160
      %p162 = scmp.ne.s32.totalorder %s154, %s156
      %p163 = scmp.eq.s32.totalorder %s31, 1
      %p164 = por %p162, %p163
      %p165 = scmp.ne.s32.totalorder %s156, %s157
      %p166 = scmp.eq.s32.totalorder %s31, 0
      %p167 = por %p165, %p166
      %p168 = scmp.ne.s32.totalorder %s156, %s157
      %p169 = scmp.eq.s32.totalorder %s32, 1
      %p170 = por %p168, %p169
      %p172 = scmp.ne.s32.totalorder %s157, %s171
      %p173 = scmp.eq.s32.totalorder %s32, 0
      %p174 = por %p172, %p173
      %s176 = sadd.s32 %s175, 1
      %p179 = scmp.eq.s32.totalorder %s26, 1
      %p180 = scmp.ne.s32.totalorder %s175, %s177
      %p181 = scmp.eq.s32.totalorder %s26, 0
      %p182 = por %p180, %p181
      %p183 = scmp.ne.s32.totalorder %s175, %s177
      %p184 = scmp.eq.s32.totalorder %s31, 1
      %p185 = por %p183, %p184
      %p186 = scmp.ne.s32.totalorder %s177, %s178
      %p187 = scmp.eq.s32.totalorder %s31, 0
      %p188 = por %p186, %p187
      %p189 = scmp.ne.s32.totalorder %s177, %s178
      %p190 = scmp.eq.s32.totalorder %s32, 1
      %p191 = por %p189, %p190
      %p193 = scmp.ne.s32.totalorder %s178, %s192
      %p194 = scmp.eq.s32.totalorder %s32, 0
      %p195 = por %p193, %p194
      %s197 = sadd.s32 %s196, 1
      %p200 = scmp.eq.s32.totalorder %s26, 1
      %p201 = scmp.ne.s32.totalorder %s196, %s198
      %p202 = scmp.eq.s32.totalorder %s26, 0
      %p203 = por %p201, %p202
      %p204 = scmp.ne.s32.totalorder %s196, %s198
      %p205 = scmp.eq.s32.totalorder %s31, 1
      %p206 = por %p204, %p205
      %p207 = scmp.ne.s32.totalorder %s198, %s199
      %p208 = scmp.eq.s32.totalorder %s31, 0
      %p209 = por %p207, %p208
      %p210 = scmp.ne.s32.totalorder %s198, %s199
      %p211 = scmp.eq.s32.totalorder %s32, 1
      %p212 = por %p210, %p211
      %p214 = scmp.ne.s32.totalorder %s199, %s213
      %p215 = scmp.eq.s32.totalorder %s32, 0
      %p216 = por %p214, %p215
      %s218 = sadd.s32 %s217, 1
      %p221 = scmp.eq.s32.totalorder %s26, 1
      %p222 = scmp.ne.s32.totalorder %s217, %s219
      %p223 = scmp.eq.s32.totalorder %s26, 0
      %p224 = por %p222, %p223
      %p225 = scmp.ne.s32.totalorder %s217, %s219
      %p226 = scmp.eq.s32.totalorder %s31, 1
      %p227 = por %p225, %p226
      %p228 = scmp.ne.s32.totalorder %s219, %s220
      %p229 = scmp.eq.s32.totalorder %s31, 0
      %p230 = por %p228, %p229
      %p231 = scmp.ne.s32.totalorder %s219, %s220
      %p232 = scmp.eq.s32.totalorder %s32, 1
      %p233 = por %p231, %p232
      %p235 = scmp.ne.s32.totalorder %s220, %s234
      %p236 = scmp.eq.s32.totalorder %s32, 0
      %p237 = por %p235, %p236
      %s238 = ssub.s32 %s26, %s33
      %p239 = scmp.eq.s32.totalorder %s238, 0
      %s241 = sadd.s32 %s240, 1
      %s242 = scalar_select %p239, %s240, %s241
      %p245 = pneg %p239
      %p246 = scmp.eq.s32.totalorder %s26, 1
      %p247 = por %p245, %p246
      %p248 = scmp.ne.s32.totalorder %s240, %s243
      %p249 = scmp.eq.s32.totalorder %s26, 0
      %p250 = por %p248, %p249
      %p251 = scmp.ne.s32.totalorder %s240, %s243
      %p252 = scmp.eq.s32.totalorder %s31, 1
      %p253 = por %p251, %p252
      %p254 = scmp.ne.s32.totalorder %s243, %s244
      %p255 = scmp.eq.s32.totalorder %s31, 0
      %p256 = por %p254, %p255
      %p257 = scmp.ne.s32.totalorder %s243, %s244
      %p258 = scmp.eq.s32.totalorder %s32, 1
      %p259 = por %p257, %p258
      %p261 = scmp.ne.s32.totalorder %s244, %s260
      %p262 = scmp.eq.s32.totalorder %s32, 0
      %p263 = por %p261, %p262
      %p264 = scmp.le.s32.totalorder 1, %s26
      %p265 = scmp.lt.s32.totalorder %s26, 3
      %p266 = pnand %p264, %p265
      %p267 = pneg %p266
      // Predicated region
      $region9: #{tpu_custom_call.1} parent=5 // pred_check
        _
      $region10: #{tpu_custom_call.1} parent=5 // pred_check_branch
        %269 = sbr.rel (%p266) target = $region12
      $region11: #{tpu_custom_call.1} parent=5 // pred_region
        %s270 = ssub.s32 %s26, 1
        // Predicated region
        $region13: #{tpu_custom_call.1} parent=11 // pred_check
          %p271 = pneg %p125
        $region14: #{tpu_custom_call.1} parent=11 // pred_check_branch
          %273 = sbr.rel (%p271) target = $region16
        $region15: #{tpu_custom_call.1} parent=11 // pred_region
          %275 = vsyncadd [#allocation9], 0
          %s276 = sshll.u32 %s3, 4
          %s277 = int_to_ptr.hbm [resolvable:$true] %s276
          %s278 = sshll.u32 [#allocation8], 4
          %s279 = int_to_ptr.vmem [resolvable:$true] %s278
          %284 = dma.hbm_to_vmem [thread:$0]  %s277, 256, %s279, [#allocation9], 64, 64, 4
        $region16: #{tpu_custom_call.1} parent=11 // pred_fallthru
          _
        // Predicated region
        $region17: #{tpu_custom_call.1} parent=11 // pred_check
          %p285 = pneg %p146
        $region18: #{tpu_custom_call.1} parent=11 // pred_check_branch
          %287 = sbr.rel (%p285) target = $region20
        $region19: #{tpu_custom_call.1} parent=11 // pred_region
          _
        $region20: #{tpu_custom_call.1} parent=11 // pred_fallthru
          _
        // Predicated region
        $region21: #{tpu_custom_call.1} parent=11 // pred_check
          %p288 = pneg %p167
        $region22: #{tpu_custom_call.1} parent=11 // pred_check_branch
          %290 = sbr.rel (%p288) target = $region24
        $region23: #{tpu_custom_call.1} parent=11 // pred_region
          %292 = vsyncadd [#allocation9], 0
          %s293 = sshll.u32 %s5, 4
          %s294 = int_to_ptr.hbm [resolvable:$true] %s293
          %s295 = sshll.u32 [#allocation10], 4
          %s296 = int_to_ptr.vmem [resolvable:$true] %s295
          %301 = dma.hbm_to_vmem [thread:$0]  %s294, 256, %s296, [#allocation9], 64, 64, 4
        $region24: #{tpu_custom_call.1} parent=11 // pred_fallthru
          _
        // Predicated region
        $region25: #{tpu_custom_call.1} parent=11 // pred_check
          %p302 = pneg %p188
        $region26: #{tpu_custom_call.1} parent=11 // pred_check_branch
          %304 = sbr.rel (%p302) target = $region28
        $region27: #{tpu_custom_call.1} parent=11 // pred_region
          %306 = vsyncadd [#allocation12], 0
          %s307 = sshll.u32 %s6, 4
          %s308 = int_to_ptr.hbm [resolvable:$true] %s307
          %s309 = sshll.u32 [#allocation11], 4
          %s310 = int_to_ptr.vmem [resolvable:$true] %s309
          %315 = dma.hbm_to_vmem [thread:$0]  %s308, 256, %s310, [#allocation12], 64, 64, 4
        $region28: #{tpu_custom_call.1} parent=11 // pred_fallthru
          _
        // Predicated region
        $region29: #{tpu_custom_call.1} parent=11 // pred_check
          %p316 = pneg %p209
        $region30: #{tpu_custom_call.1} parent=11 // pred_check_branch
          %318 = sbr.rel (%p316) target = $region32
        $region31: #{tpu_custom_call.1} parent=11 // pred_region
          %320 = vsyncadd [#allocation12], 0
          %s321 = sshll.u32 %s7, 4
          %s322 = int_to_ptr.hbm [resolvable:$true] %s321
          %s323 = sshll.u32 [#allocation13], 4
          %s324 = int_to_ptr.vmem [resolvable:$true] %s323
          %329 = dma.hbm_to_vmem [thread:$0]  %s322, 256, %s324, [#allocation12], 64, 64, 4
        $region32: #{tpu_custom_call.1} parent=11 // pred_fallthru
          _
        // Predicated region
        $region33: #{tpu_custom_call.1} parent=11 // pred_check
          %p330 = pneg %p230
        $region34: #{tpu_custom_call.1} parent=11 // pred_check_branch
          %332 = sbr.rel (%p330) target = $region36
        $region35: #{tpu_custom_call.1} parent=11 // pred_region
          _
        $region36: #{tpu_custom_call.1} parent=11 // pred_fallthru
          _
      $region12: #{tpu_custom_call.1} parent=5 // pred_fallthru
        _
      %p333 = scmp.lt.s32.totalorder %s26, 2
      // Predicated region
      $region37: #{tpu_custom_call.1} parent=5 // pred_check
        %p334 = pneg %p333
      $region38: #{tpu_custom_call.1} parent=5 // pred_check_branch
        %336 = sbr.rel (%p334) target = $region40
      $region39: #{tpu_custom_call.1} parent=5 // pred_region
        // Predicated region
        $region41: #{tpu_custom_call.1} parent=39 // pred_check
          %p337 = pneg %p46
        $region42: #{tpu_custom_call.1} parent=39 // pred_check_branch
          %339 = sbr.rel (%p337) target = $region44
        $region43: #{tpu_custom_call.1} parent=39 // pred_region
          %s340 = sand.u32 %s36, 1
          %s341 = scalar_lea.sflag [#allocation3], %s340
          %s342 = sand.u32 %s36, 1
          %s343 = smul.addr %s342, 8
          %s344 = scalar_lea.vmem [#allocation2], %s343
          %346 = vsyncadd %s341, 0
          %s347 = smul.addr %s26, 8
          %s348 = scalar_lea.hbm %s0, %s347
          %s350 = sshll.u32 %s348, 4
          %s351 = int_to_ptr.hbm [resolvable:$true] %s350
          %s352 = sshll.u32 %s344, 4
          %s353 = int_to_ptr.vmem [resolvable:$true] %s352
          %355 = dma.hbm_to_vmem [thread:$0]  %s351, 128, %s353, %s341
        $region44: #{tpu_custom_call.1} parent=39 // pred_fallthru
          _
        // Predicated region
        $region45: #{tpu_custom_call.1} parent=39 // pred_check
          %p356 = pneg %p72
        $region46: #{tpu_custom_call.1} parent=39 // pred_check_branch
          %358 = sbr.rel (%p356) target = $region48
        $region47: #{tpu_custom_call.1} parent=39 // pred_region
          %s359 = sand.u32 %s26, 1
          %s360 = scalar_lea.sflag [#allocation6], %s359
          %s361 = sand.u32 %s62, 1
          %s362 = smul.addr %s361, 8
          %s363 = scalar_lea.vmem [#allocation5], %s362
          %365 = vsyncadd %s360, 0
          %s366 = smul.addr %s26, 8
          %s367 = scalar_lea.hbm %s1, %s366
          %s369 = sshll.u32 %s367, 4
          %s370 = int_to_ptr.hbm [resolvable:$true] %s369
          %s371 = sshll.u32 %s363, 4
          %s372 = int_to_ptr.vmem [resolvable:$true] %s371
          %374 = dma.hbm_to_vmem [thread:$0]  %s370, 128, %s372, %s360
        $region48: #{tpu_custom_call.1} parent=39 // pred_fallthru
          _
        // Predicated region
        $region49: #{tpu_custom_call.1} parent=39 // pred_check
          %p375 = pneg %p98
        $region50: #{tpu_custom_call.1} parent=39 // pred_check_branch
          %377 = sbr.rel (%p375) target = $region52
        $region51: #{tpu_custom_call.1} parent=39 // pred_region
          %s378 = sand.u32 %s26, 1
          %s379 = scalar_lea.sflag [#allocation6], %s378
          %s380 = sand.u32 %s88, 1
          %s381 = smul.addr %s380, 8
          %s382 = scalar_lea.vmem [#allocation7], %s381
          %384 = vsyncadd %s379, 0
          %s385 = smul.addr %s26, 8
          %s386 = scalar_lea.hbm %s2, %s385
          %s388 = sshll.u32 %s386, 4
          %s389 = int_to_ptr.hbm [resolvable:$true] %s388
          %s390 = sshll.u32 %s382, 4
          %s391 = int_to_ptr.vmem [resolvable:$true] %s390
          %393 = dma.hbm_to_vmem [thread:$0]  %s389, 128, %s391, %s379
        $region52: #{tpu_custom_call.1} parent=39 // pred_fallthru
          _
      $region40: #{tpu_custom_call.1} parent=5 // pred_fallthru
        _
      %p394 = scmp.le.s32.totalorder 1, %s26
      %p395 = scmp.lt.s32.totalorder %s26, 3
      %p396 = pnand %p394, %p395
      %p397 = pneg %p396
      // Predicated region
      $region53: #{tpu_custom_call.1} parent=5 // pred_check
        _
      $region54: #{tpu_custom_call.1} parent=5 // pred_check_branch
        %399 = sbr.rel (%p396) target = $region56
      $region55: #{tpu_custom_call.1} parent=5 // pred_region
        %s400 = ssub.s32 %s26, 1
        %s401 = sand.u32 %s39, 1
        %s402 = scalar_lea.sflag [#allocation3], %s401
        %s403 = sand.u32 %s39, 1
        %s404 = smul.addr %s403, 8
        %s405 = scalar_lea.vmem [#allocation2], %s404
        // Predicated region
        $region57: #{tpu_custom_call.1} parent=55 // pred_check
          %p406 = pneg %p52
        $region58: #{tpu_custom_call.1} parent=55 // pred_check_branch
          %408 = sbr.rel (%p406) target = $region60
        $region59: #{tpu_custom_call.1} parent=55 // pred_region
          %410 = dma.done %s402, 128
        $region60: #{tpu_custom_call.1} parent=55 // pred_fallthru
          _
        %s411 = sand.u32 %s31, 1
        %s412 = scalar_lea.sflag [#allocation6], %s411
        %s413 = sand.u32 %s65, 1
        %s414 = smul.addr %s413, 8
        %s415 = scalar_lea.vmem [#allocation5], %s414
        // Predicated region
        $region61: #{tpu_custom_call.1} parent=55 // pred_check
          %p416 = pneg %p78
        $region62: #{tpu_custom_call.1} parent=55 // pred_check_branch
          %418 = sbr.rel (%p416) target = $region64
        $region63: #{tpu_custom_call.1} parent=55 // pred_region
          %420 = dma.done %s412, 128
        $region64: #{tpu_custom_call.1} parent=55 // pred_fallthru
          _
        %s421 = sand.u32 %s31, 1
        %s422 = scalar_lea.sflag [#allocation6], %s421
        %s423 = sand.u32 %s91, 1
        %s424 = smul.addr %s423, 8
        %s425 = scalar_lea.vmem [#allocation7], %s424
        // Predicated region
        $region65: #{tpu_custom_call.1} parent=55 // pred_check
          %p426 = pneg %p104
        $region66: #{tpu_custom_call.1} parent=55 // pred_check_branch
          %428 = sbr.rel (%p426) target = $region68
        $region67: #{tpu_custom_call.1} parent=55 // pred_region
          %430 = dma.done %s422, 128
        $region68: #{tpu_custom_call.1} parent=55 // pred_fallthru
          _
        // Predicated region
        $region69: #{tpu_custom_call.1} parent=55 // pred_check
          %p431 = pneg %p125
        $region70: #{tpu_custom_call.1} parent=55 // pred_check_branch
          %433 = sbr.rel (%p431) target = $region72
        $region71: #{tpu_custom_call.1} parent=55 // pred_region
          %435 = dma.done [#allocation9], 256
        $region72: #{tpu_custom_call.1} parent=55 // pred_fallthru
          _
        // Predicated region
        $region73: #{tpu_custom_call.1} parent=55 // pred_check
          %p436 = pneg %p167
        $region74: #{tpu_custom_call.1} parent=55 // pred_check_branch
          %438 = sbr.rel (%p436) target = $region76
        $region75: #{tpu_custom_call.1} parent=55 // pred_region
          %440 = dma.done [#allocation9], 256
        $region76: #{tpu_custom_call.1} parent=55 // pred_fallthru
          _
        // Predicated region
        $region77: #{tpu_custom_call.1} parent=55 // pred_check
          %p441 = pneg %p188
        $region78: #{tpu_custom_call.1} parent=55 // pred_check_branch
          %443 = sbr.rel (%p441) target = $region80
        $region79: #{tpu_custom_call.1} parent=55 // pred_region
          %445 = dma.done [#allocation12], 256
        $region80: #{tpu_custom_call.1} parent=55 // pred_fallthru
          _
        // Predicated region
        $region81: #{tpu_custom_call.1} parent=55 // pred_check
          %p446 = pneg %p209
        $region82: #{tpu_custom_call.1} parent=55 // pred_check_branch
          %448 = sbr.rel (%p446) target = $region84
        $region83: #{tpu_custom_call.1} parent=55 // pred_region
          %450 = dma.done [#allocation12], 256
        $region84: #{tpu_custom_call.1} parent=55 // pred_fallthru
          _
        %s451 = sand.u32 %s39, 1
        %s452 = scalar_lea.sflag [#allocation3], %s451
        %s453 = sand.u32 %s39, 1
        %s454 = smul.addr %s453, 8
        %s455 = scalar_lea.vmem [#allocation2], %s454
        %p456 = pneg %p52
        %p457 = pneg %p49
        %s458 = sand.u32 %s31, 1
        %s459 = scalar_lea.sflag [#allocation6], %s458
        %s460 = sand.u32 %s65, 1
        %s461 = smul.addr %s460, 8
        %s462 = scalar_lea.vmem [#allocation5], %s461
        %p463 = pneg %p78
        %p464 = pneg %p75
        %s465 = sand.u32 %s31, 1
        %s466 = scalar_lea.sflag [#allocation6], %s465
        %s467 = sand.u32 %s91, 1
        %s468 = smul.addr %s467, 8
        %s469 = scalar_lea.vmem [#allocation7], %s468
        %p470 = pneg %p104
        %p471 = pneg %p101
        %p472 = pneg %p125
        %p473 = pneg %p122
        %p474 = pneg %p146
        %p475 = pneg %p143
        %p476 = pneg %p167
        %p477 = pneg %p164
        %p478 = pneg %p188
        %p479 = pneg %p185
        %p480 = pneg %p209
        %p481 = pneg %p206
        %p482 = pneg %p230
        %p483 = pneg %p227
        %p484 = pneg %p256
        %p485 = pneg %p253
        %s486 = sand.u32 %s243, 1
        %s487 = scalar_lea.sflag [#allocation4], %s486
        %s488 = sand.u32 %s243, 1
        %s489 = smul.addr %s488, 8
        %s490 = scalar_lea.vmem [#allocation14], %s489
        %v492 = vld [vmem:[%s405] sm:$0xff]
        %v493 = vpack.c.bf16 %v492, %v492
        %v494 = vld [vmem:[%s415] sm:$0xff]
        %v495 = vpack.c.bf16 %v494, %v494
        %v496 = vld [vmem:[%s425] sm:$0xff]
        %v497 = vpack.c.bf16 %v496, %v496
        %v498 = vld [vmem:[#allocation8] sm:$0xf]
        %v499 = vld [vmem:[#allocation8 + $0x4] sm:$0xf]
        %v500 = vld [vmem:[#allocation8 + $0x8] sm:$0xf]
        %v501 = vld [vmem:[#allocation8 + $0xc] sm:$0xf]
        %v502 = vld [vmem:[%s4] sm:$0x1]
        %v504 = vperm.slane %v502, 0
        %v510 = vunpack.c.l.b16 %v498
        %v511 = vunpack.c.l.b16 %v499
        %v512 = vunpack.c.l.b16 %v500
        %v513 = vunpack.c.l.b16 %v501
        %v514 = vpack.c.b16 %v511, %v510
        %v515 = vpack.c.b16 %v513, %v512
        %vm518 = vcmask 261120
        %v520 = vsel %vm518, %v493, 0
        %522 = vmatpush.bf16.msra.mxu0 0
        %523 = vmatpush.bf16.msra.mxu0 0
        %524 = vmatpush.bf16.msra.mxu0 0
        %525 = vmatpush.bf16.msra.mxu0 0
        %526 = vmatpush.bf16.msra.mxu0 0
        %527 = vmatpush.bf16.msra.mxu0 0
        %528 = vmatpush.bf16.msra.mxu0 %v515
        %529 = vmatpush.bf16.msra.mxu0 %v514
        %530 = vmatmul.bf16.gmra.mxu0 %v520
        %v531 = vpop.f32.mrf.mxu0
        %v532 = vadd.f32 %v504, %v531
        %v533 = vpop.f32.mrf.mxu0
        %534 = vdwg.mxu0
        %v535 = vpack.c.bf16 %v532, %v532
        %v536 = vld [vmem:[#allocation10] sm:$0xf]
        %v537 = vld [vmem:[#allocation10 + $0x4] sm:$0xf]
        %v538 = vld [vmem:[#allocation10 + $0x8] sm:$0xf]
        %v539 = vld [vmem:[#allocation10 + $0xc] sm:$0xf]
        %v544 = vunpack.c.l.b16 %v536
        %v545 = vunpack.c.l.b16 %v537
        %v546 = vunpack.c.l.b16 %v538
        %v547 = vunpack.c.l.b16 %v539
        %v548 = vpack.c.b16 %v545, %v544
        %v549 = vpack.c.b16 %v547, %v546
        %v553 = vsel %vm518, %v495, 0
        %555 = vmatpush.bf16.msra.mxu0 0
        %556 = vmatpush.bf16.msra.mxu0 0
        %557 = vmatpush.bf16.msra.mxu0 0
        %558 = vmatpush.bf16.msra.mxu0 0
        %559 = vmatpush.bf16.msra.mxu0 0
        %560 = vmatpush.bf16.msra.mxu0 0
        %561 = vmatpush.bf16.msra.mxu0 %v549
        %562 = vmatpush.bf16.msra.mxu0 %v548
        %563 = vmatmul.bf16.gmra.mxu0 %v553
        %v564 = vpop.f32.mrf.mxu0
        %v565 = vadd.f32 0.0, %v564
        %v566 = vpop.f32.mrf.mxu0
        %567 = vdwg.mxu0
        %v568 = vpack.c.bf16 %v565, %v565
        %v569 = vld [vmem:[#allocation11] sm:$0xf]
        %v570 = vld [vmem:[#allocation11 + $0x4] sm:$0xf]
        %v571 = vld [vmem:[#allocation11 + $0x8] sm:$0xf]
        %v572 = vld [vmem:[#allocation11 + $0xc] sm:$0xf]
        %v577 = vunpack.c.l.b16 %v569
        %v578 = vunpack.c.l.b16 %v570
        %v579 = vunpack.c.l.b16 %v571
        %v580 = vunpack.c.l.b16 %v572
        %v581 = vpack.c.b16 %v578, %v577
        %v582 = vpack.c.b16 %v580, %v579
        %v586 = vsel %vm518, %v497, 0
        %588 = vmatpush.bf16.msra.mxu0 0
        %589 = vmatpush.bf16.msra.mxu0 0
        %590 = vmatpush.bf16.msra.mxu0 0
        %591 = vmatpush.bf16.msra.mxu0 0
        %592 = vmatpush.bf16.msra.mxu0 0
        %593 = vmatpush.bf16.msra.mxu0 0
        %594 = vmatpush.bf16.msra.mxu0 %v582
        %595 = vmatpush.bf16.msra.mxu0 %v581
        %596 = vmatmul.bf16.gmra.mxu0 %v586
        %v597 = vpop.f32.mrf.mxu0
        %v598 = vadd.f32 0.0, %v597
        %v599 = vpop.f32.mrf.mxu0
        %600 = vdwg.mxu0
        %v601 = vpack.c.bf16 %v598, %v598
        %vm602 = vcmask 64512
        %v604 = vsel %vm602, %v535, 0
        %v607 = vsel %vm602, %v568, 0
        %609 = vmatpush.bf16.xpose.msra.mxu0 0
        %610 = vmatpush.bf16.xpose.msra.mxu0 0
        %611 = vmatpush.bf16.xpose.msra.mxu0 0
        %612 = vmatpush.bf16.xpose.msra.mxu0 0
        %613 = vmatpush.bf16.xpose.msra.mxu0 0
        %614 = vmatpush.bf16.xpose.msra.mxu0 0
        %615 = vmatpush.bf16.xpose.msra.mxu0 0
        %616 = vmatpush.bf16.xpose.msra.mxu0 %v607
        %617 = vmatmul.bf16.gmra.mxu0 %v604
        %v618 = vpop.f32.mrf.mxu0
        %v619 = vadd.f32 0.0, %v618
        %v620 = vpop.f32.mrf.mxu0
        %621 = vdwg.mxu0
        %v622 = vsel %vm602, %v619, -inf
        %623 = vmax.xlane.f32.xlu0 %v622
        %v624 = vpop.xlane.xlu0 %623
        %v625 = vsub.f32 %v619, %v624
        %v626 = vmul.f32 %v625, 1.442695
        %v627 = vpow.pop %v626
        %v628 = vsel %vm602, %v627, 0.0
        %629 = vadd.xlane.f32.xlu0 %v628
        %v630 = vpop.xlane.xlu0 %629
        %v631 = vrcp.pop %v630
        %v632 = vmul.f32 %v627, %v631
        %v633 = vpack.c.bf16 %v632, %v632
        %v635 = vsel %vm602, %v633, 0
        %vm637 = vcmask 1043456
        %v639 = vsel %vm637, %v601, 0
        %641 = vmatpush.bf16.msra.mxu0 0
        %642 = vmatpush.bf16.msra.mxu0 0
        %643 = vmatpush.bf16.msra.mxu0 0
        %644 = vmatpush.bf16.msra.mxu0 0
        %645 = vmatpush.bf16.msra.mxu0 0
        %646 = vmatpush.bf16.msra.mxu0 0
        %647 = vmatpush.bf16.msra.mxu0 0
        %648 = vmatpush.bf16.msra.mxu0 %v639
        %649 = vmatmul.bf16.gmra.mxu0 %v635
        %v650 = vpop.f32.mrf.mxu0
        %v651 = vadd.f32 0.0, %v650
        %v652 = vpop.f32.mrf.mxu0
        %653 = vdwg.mxu0
        %v654 = vpack.c.bf16 %v651, %v651
        %v656 = vunpack.c.l.b16 %v535
        %v657 = vpack.c.b16 %v656, %v656
        %658 = vrot.lane.b32.xlu0 %v657, 120
        %v659 = vpop.permute.xlu0 %658
        %v661 = vunpack.c.l.b16 %v568
        %v662 = vpack.c.b16 %v661, %v661
        %663 = vrot.lane.b32.xlu0 %v662, 120
        %v664 = vpop.permute.xlu0 %663
        %v666 = vsel %vm602, %v659, 0
        %v669 = vsel %vm602, %v664, 0
        %671 = vmatpush.bf16.xpose.msra.mxu0 0
        %672 = vmatpush.bf16.xpose.msra.mxu0 0
        %673 = vmatpush.bf16.xpose.msra.mxu0 0
        %674 = vmatpush.bf16.xpose.msra.mxu0 0
        %675 = vmatpush.bf16.xpose.msra.mxu0 0
        %676 = vmatpush.bf16.xpose.msra.mxu0 0
        %677 = vmatpush.bf16.xpose.msra.mxu0 0
        %678 = vmatpush.bf16.xpose.msra.mxu0 %v669
        %679 = vmatmul.bf16.gmra.mxu0 %v666
        %v680 = vpop.f32.mrf.mxu0
        %v681 = vadd.f32 0.0, %v680
        %v682 = vpop.f32.mrf.mxu0
        %683 = vdwg.mxu0
        %v684 = vsel %vm602, %v681, -inf
        %685 = vmax.xlane.f32.xlu0 %v684
        %v686 = vpop.xlane.xlu0 %685
        %v687 = vsub.f32 %v681, %v686
        %v688 = vmul.f32 %v687, 1.442695
        %v689 = vpow.pop %v688
        %v690 = vsel %vm602, %v689, 0.0
        %691 = vadd.xlane.f32.xlu0 %v690
        %v692 = vpop.xlane.xlu0 %691
        %v693 = vrcp.pop %v692
        %v694 = vmul.f32 %v689, %v693
        %v695 = vpack.c.bf16 %v694, %v694
        %v697 = vunpack.c.l.b16 %v601
        %v698 = vpack.c.b16 %v697, %v697
        %699 = vrot.lane.b32.xlu0 %v698, 120
        %v700 = vpop.permute.xlu0 %699
        %v702 = vsel %vm602, %v695, 0
        %v705 = vsel %vm637, %v700, 0
        %707 = vmatpush.bf16.msra.mxu0 0
        %708 = vmatpush.bf16.msra.mxu0 0
        %709 = vmatpush.bf16.msra.mxu0 0
        %710 = vmatpush.bf16.msra.mxu0 0
        %711 = vmatpush.bf16.msra.mxu0 0
        %712 = vmatpush.bf16.msra.mxu0 0
        %713 = vmatpush.bf16.msra.mxu0 0
        %714 = vmatpush.bf16.msra.mxu0 %v705
        %715 = vmatmul.bf16.gmra.mxu0 %v702
        %v716 = vpop.f32.mrf.mxu0
        %v717 = vadd.f32 0.0, %v716
        %v718 = vpop.f32.mrf.mxu0
        %719 = vdwg.mxu0
        %v720 = vpack.c.bf16 %v717, %v717
        %721 = vrot.lane.b32.xlu0 %v657, 112
        %v722 = vpop.permute.xlu0 %721
        %723 = vrot.lane.b32.xlu0 %v662, 112
        %v724 = vpop.permute.xlu0 %723
        %v726 = vsel %vm602, %v722, 0
        %v729 = vsel %vm602, %v724, 0
        %731 = vmatpush.bf16.xpose.msra.mxu0 0
        %732 = vmatpush.bf16.xpose.msra.mxu0 0
        %733 = vmatpush.bf16.xpose.msra.mxu0 0
        %734 = vmatpush.bf16.xpose.msra.mxu0 0
        %735 = vmatpush.bf16.xpose.msra.mxu0 0
        %736 = vmatpush.bf16.xpose.msra.mxu0 0
        %737 = vmatpush.bf16.xpose.msra.mxu0 0
        %738 = vmatpush.bf16.xpose.msra.mxu0 %v729
        %739 = vmatmul.bf16.gmra.mxu0 %v726
        %v740 = vpop.f32.mrf.mxu0
        %v741 = vadd.f32 0.0, %v740
        %v742 = vpop.f32.mrf.mxu0
        %743 = vdwg.mxu0
        %v744 = vsel %vm602, %v741, -inf
        %745 = vmax.xlane.f32.xlu0 %v744
        %v746 = vpop.xlane.xlu0 %745
        %v747 = vsub.f32 %v741, %v746
        %v748 = vmul.f32 %v747, 1.442695
        %v749 = vpow.pop %v748
        %v750 = vsel %vm602, %v749, 0.0
        %751 = vadd.xlane.f32.xlu0 %v750
        %v752 = vpop.xlane.xlu0 %751
        %v753 = vrcp.pop %v752
        %v754 = vmul.f32 %v749, %v753
        %v755 = vpack.c.bf16 %v754, %v754
        %756 = vrot.lane.b32.xlu0 %v698, 112
        %v757 = vpop.permute.xlu0 %756
        %v759 = vsel %vm602, %v755, 0
        %v762 = vsel %vm637, %v757, 0
        %764 = vmatpush.bf16.msra.mxu0 0
        %765 = vmatpush.bf16.msra.mxu0 0
        %766 = vmatpush.bf16.msra.mxu0 0
        %767 = vmatpush.bf16.msra.mxu0 0
        %768 = vmatpush.bf16.msra.mxu0 0
        %769 = vmatpush.bf16.msra.mxu0 0
        %770 = vmatpush.bf16.msra.mxu0 0
        %771 = vmatpush.bf16.msra.mxu0 %v762
        %772 = vmatmul.bf16.gmra.mxu0 %v759
        %v773 = vpop.f32.mrf.mxu0
        %v774 = vadd.f32 0.0, %v773
        %v775 = vpop.f32.mrf.mxu0
        %776 = vdwg.mxu0
        %v777 = vpack.c.bf16 %v774, %v774
        %778 = vrot.lane.b32.xlu0 %v657, 104
        %v779 = vpop.permute.xlu0 %778
        %780 = vrot.lane.b32.xlu0 %v662, 104
        %v781 = vpop.permute.xlu0 %780
        %v783 = vsel %vm602, %v779, 0
        %v786 = vsel %vm602, %v781, 0
        %788 = vmatpush.bf16.xpose.msra.mxu0 0
        %789 = vmatpush.bf16.xpose.msra.mxu0 0
        %790 = vmatpush.bf16.xpose.msra.mxu0 0
        %791 = vmatpush.bf16.xpose.msra.mxu0 0
        %792 = vmatpush.bf16.xpose.msra.mxu0 0
        %793 = vmatpush.bf16.xpose.msra.mxu0 0
        %794 = vmatpush.bf16.xpose.msra.mxu0 0
        %795 = vmatpush.bf16.xpose.msra.mxu0 %v786
        %796 = vmatmul.bf16.gmra.mxu0 %v783
        %v797 = vpop.f32.mrf.mxu0
        %v798 = vadd.f32 0.0, %v797
        %v799 = vpop.f32.mrf.mxu0
        %800 = vdwg.mxu0
        %v801 = vsel %vm602, %v798, -inf
        %802 = vmax.xlane.f32.xlu0 %v801
        %v803 = vpop.xlane.xlu0 %802
        %v804 = vsub.f32 %v798, %v803
        %v805 = vmul.f32 %v804, 1.442695
        %v806 = vpow.pop %v805
        %v807 = vsel %vm602, %v806, 0.0
        %808 = vadd.xlane.f32.xlu0 %v807
        %v809 = vpop.xlane.xlu0 %808
        %v810 = vrcp.pop %v809
        %v811 = vmul.f32 %v806, %v810
        %v812 = vpack.c.bf16 %v811, %v811
        %813 = vrot.lane.b32.xlu0 %v698, 104
        %v814 = vpop.permute.xlu0 %813
        %v816 = vsel %vm602, %v812, 0
        %v819 = vsel %vm637, %v814, 0
        %821 = vmatpush.bf16.msra.mxu0 0
        %822 = vmatpush.bf16.msra.mxu0 0
        %823 = vmatpush.bf16.msra.mxu0 0
        %824 = vmatpush.bf16.msra.mxu0 0
        %825 = vmatpush.bf16.msra.mxu0 0
        %826 = vmatpush.bf16.msra.mxu0 0
        %827 = vmatpush.bf16.msra.mxu0 0
        %828 = vmatpush.bf16.msra.mxu0 %v819
        %829 = vmatmul.bf16.gmra.mxu0 %v816
        %v830 = vpop.f32.mrf.mxu0
        %v831 = vadd.f32 0.0, %v830
        %v832 = vpop.f32.mrf.mxu0
        %833 = vdwg.mxu0
        %v834 = vpack.c.bf16 %v831, %v831
        %v836 = vunpack.c.l.b16 %v720
        %v837 = vpack.c.b16 %v836, %v836
        %838 = vrot.lane.b32.xlu0 %v837, 8
        %v839 = vpop.permute.xlu0 %838
        %v841 = vunpack.c.l.b16 %v777
        %v842 = vpack.c.b16 %v841, %v841
        %843 = vrot.lane.b32.xlu0 %v842, 16
        %v844 = vpop.permute.xlu0 %843
        %v846 = vunpack.c.l.b16 %v834
        %v847 = vpack.c.b16 %v846, %v846
        %848 = vrot.lane.b32.xlu0 %v847, 24
        %v849 = vpop.permute.xlu0 %848
        %v852 = vsel %vm602, %v654, %v839
        %vm853 = vcmask 130048
        %v855 = vsel %vm853, %v852, %v844
        %vm856 = vcmask 195584
        %v858 = vsel %vm856, %v855, %v849
        %v859 = vld [vmem:[#allocation13] sm:$0xf]
        %v860 = vld [vmem:[#allocation13 + $0x4] sm:$0xf]
        %v861 = vld [vmem:[#allocation13 + $0x8] sm:$0xf]
        %v862 = vld [vmem:[#allocation13 + $0xc] sm:$0xf]
        %v863 = vld [vmem:[%s8] sm:$0x1]
        %v865 = vperm.slane %v863, 0
        %v871 = vunpack.c.l.b16 %v859
        %v872 = vunpack.c.l.b16 %v860
        %v873 = vunpack.c.l.b16 %v861
        %v874 = vunpack.c.l.b16 %v862
        %v875 = vpack.c.b16 %v872, %v871
        %v876 = vpack.c.b16 %v874, %v873
        %v879 = vsel %vm518, %v858, 0
        %881 = vmatpush.bf16.msra.mxu0 0
        %882 = vmatpush.bf16.msra.mxu0 0
        %883 = vmatpush.bf16.msra.mxu0 0
        %884 = vmatpush.bf16.msra.mxu0 0
        %885 = vmatpush.bf16.msra.mxu0 0
        %886 = vmatpush.bf16.msra.mxu0 0
        %887 = vmatpush.bf16.msra.mxu0 %v876
        %888 = vmatpush.bf16.msra.mxu0 %v875
        %889 = vmatmul.bf16.gmra.mxu0 %v879
        %v890 = vpop.f32.mrf.mxu0
        %v891 = vadd.f32 %v865, %v890
        %v892 = vpop.f32.mrf.mxu0
        %893 = vdwg.mxu0
        %894 = vst.msk [vmem:[%s490] sm:$0xff] %vm518, %v891
        %s895 = sand.u32 %s243, 1
        %s896 = scalar_lea.sflag [#allocation4], %s895
        %s897 = sand.u32 %s243, 1
        %s898 = smul.addr %s897, 8
        %s899 = scalar_lea.vmem [#allocation14], %s898
        // Predicated region
        $region85: #{tpu_custom_call.1} parent=55 // pred_check
          %p900 = pneg %p253
        $region86: #{tpu_custom_call.1} parent=55 // pred_check_branch
          %902 = sbr.rel (%p900) target = $region88
        $region87: #{tpu_custom_call.1} parent=55 // pred_region
          %904 = vsyncadd %s896, 0
          %s905 = smul.addr %s31, 8
          %s906 = scalar_lea.hbm %s9, %s905
          %s908 = sshll.u32 %s899, 4
          %s909 = int_to_ptr.vmem [resolvable:$true] %s908
          %s910 = sshll.u32 %s906, 4
          %s911 = int_to_ptr.hbm [resolvable:$true] %s910
          %913 = dma.vmem_to_hbm [thread:$0]  %s909, 128, %s911, %s896
        $region88: #{tpu_custom_call.1} parent=55 // pred_fallthru
          _
      $region56: #{tpu_custom_call.1} parent=5 // pred_fallthru
        _
      %p914 = scmp.le.s32.totalorder 2, %s26
      // Predicated region
      $region89: #{tpu_custom_call.1} parent=5 // pred_check
        %p915 = pneg %p914
      $region90: #{tpu_custom_call.1} parent=5 // pred_check_branch
        %917 = sbr.rel (%p915) target = $region92
      $region91: #{tpu_custom_call.1} parent=5 // pred_region
        %s918 = ssub.s32 %s26, 2
        // Predicated region
        $region93: #{tpu_custom_call.1} parent=91 // pred_check
          %p919 = pneg %p259
        $region94: #{tpu_custom_call.1} parent=91 // pred_check_branch
          %921 = sbr.rel (%p919) target = $region96
        $region95: #{tpu_custom_call.1} parent=91 // pred_region
          %s922 = sand.u32 %s244, 1
          %s923 = scalar_lea.sflag [#allocation4], %s922
          %s924 = sand.u32 %s244, 1
          %s925 = smul.addr %s924, 8
          %s926 = scalar_lea.vmem [#allocation14], %s925
          %928 = dma.done %s923, 128
        $region96: #{tpu_custom_call.1} parent=91 // pred_fallthru
          _
      $region92: #{tpu_custom_call.1} parent=5 // pred_fallthru
        _
    $region6: #{tpu_custom_call.1} parent=1 // loop_footer
      %s30 = sadd.s32 1, %s26
    $region7: #{tpu_custom_call.1} parent=1 // loop_footer_branch
      %25 = sbr.rel target = $region3
    $region8: #{tpu_custom_call.1} parent=1 // loop_exit
      _
    %929 = vsyncpa [#allocation3], 1
    %s930 = scalar_lea.sflag [#allocation3], 1
    %931 = vsyncpa %s930, 1
    %932 = vsyncpa [#allocation6], 1
    %s933 = scalar_lea.sflag [#allocation6], 1
    %934 = vsyncpa %s933, 1
    %935 = vsyncpa [#allocation9], 1
    %936 = vsyncpa [#allocation12], 1
    %937 = vsyncpa [#allocation4], 1
    %s938 = scalar_lea.sflag [#allocation4], 1
    %939 = vsyncpa %s938, 1

// kernel: tpu_custom_call.1
$region0: #{tpu_custom_call.1}
  #allocation0 [shape = 'u32[]', space=smem, size = 0x4, offset = 0x4, fixed_abs, tag = 'smem constant byte address 0x4 - core index']
  #allocation1 [shape = 'u32[72,128]{1,0:T(1,128)}', space=vmem, size = 0x9000, scoped, tag = 'internal scratch']
  %s0 = inlined_call_operand.hbm [shape: f32[2,8,32], index: 0, kind: input, shape index: {}]
  %s1 = inlined_call_operand.hbm [shape: f32[2,8,32], index: 1, kind: input, shape index: {}]
  %s2 = inlined_call_operand.hbm [shape: f32[2,8,32], index: 2, kind: input, shape index: {}]
  %s3 = inlined_call_operand.hbm [shape: bf16[32,32], index: 3, kind: input, shape index: {}]
  %s4 = inlined_call_operand.vmem [shape: f32[1,32], index: 4, kind: input, shape index: {}]
  %s5 = inlined_call_operand.hbm [shape: bf16[32,32], index: 5, kind: input, shape index: {}]
  %s6 = inlined_call_operand.hbm [shape: bf16[32,32], index: 6, kind: input, shape index: {}]
  %s7 = inlined_call_operand.hbm [shape: bf16[32,32], index: 7, kind: input, shape index: {}]
  %s8 = inlined_call_operand.vmem [shape: f32[1,32], index: 8, kind: input, shape index: {}]
  %s9 = inlined_call_operand.hbm [shape: f32[2,8,32], index: 9, kind: output, shape index: {}]
  %s10 = sld [smem:[#allocation0]]
  $region97: #{tpu_custom_call.1} parent=0
    _
  %s12 = ssub.s32 1, %s10
  %s13 = scalar_select 0, %s12, %s10
  $region1: #{tpu_custom_call.1} parent=0
    #allocation2 [shape = 'u8[8192]{0}', space=vmem, size = 0x2000, scoped, tag = 'input window, operand 0']
    #allocation3 [shape = 's32[2]{0}', space=sflag, size = 0x8, scoped, tag = 'scoped memory for tpu_custom_call.1']
    #allocation4 [shape = 's32[2]{0}', space=sflag, size = 0x8, scoped, tag = 'scoped memory for tpu_custom_call.1']
    #allocation5 [shape = 'u8[8192]{0}', space=vmem, size = 0x2000, scoped, tag = 'input window, operand 1']
    #allocation6 [shape = 's32[2]{0}', space=sflag, size = 0x8, scoped, tag = 'scoped memory for tpu_custom_call.1']
    #allocation7 [shape = 'u8[8192]{0}', space=vmem, size = 0x2000, scoped, tag = 'input window, operand 2']
    #allocation8 [shape = 'u8[8192]{0}', space=vmem, size = 0x2000, scoped, tag = 'input window, operand 3, single buffered']
    #allocation9 [shape = 's32[1]{0}', space=sflag, size = 0x4, scoped, tag = 'scoped memory for tpu_custom_call.1']
    #allocation10 [shape = 'u8[8192]{0}', space=vmem, size = 0x2000, scoped, tag = 'input window, operand 5, single buffered']
    #allocation11 [shape = 'u8[8192]{0}', space=vmem, size = 0x2000, scoped, tag = 'input window, operand 6, single buffered']
    #allocation12 [shape = 's32[1]{0}', space=sflag, size = 0x4, scoped, tag = 'scoped memory for tpu_custom_call.1']
    #allocation13 [shape = 'u8[8192]{0}', space=vmem, size = 0x2000, scoped, tag = 'input window, operand 7, single buffered']
    #allocation14 [shape = 'u8[8192]{0}', space=vmem, size = 0x2000, scoped, tag = 'output window, operand 0']
    %14 = vsyncpa [#allocation3], 0
    %s15 = scalar_lea.sflag [#allocation3], 1
    %16 = vsyncpa %s15, 0
    %17 = vsyncpa [#allocation6], 0
    %s18 = scalar_lea.sflag [#allocation6], 1
    %19 = vsyncpa %s18, 0
    %20 = vsyncpa [#allocation9], 0
    %21 = vsyncpa [#allocation12], 0
    %22 = vsyncpa [#allocation4], 0
    %s23 = scalar_lea.sflag [#allocation4], 1
    %24 = vsyncpa %s23, 0
    loop: start=0, step=1, limit=4
    $region2: #{tpu_custom_call.1} parent=1 // loop_pre_header
      _
    $region3: #{tpu_custom_call.1} parent=1 // loop_header
      %s26 = sphi 0, %s30
      %p27 = scmp.ge.s32.totalorder %s26, 4
      %s36 = sphi 0, %s38
      %s39 = sphi 0, %s36
      %s40 = sphi 0, %s39
      %s56 = sphi 0, %s40
      %s62 = sphi 0, %s64
      %s65 = sphi 0, %s62
      %s66 = sphi 0, %s65
      %s82 = sphi 0, %s66
      %s88 = sphi 0, %s90
      %s91 = sphi 0, %s88
      %s92 = sphi 0, %s91
      %s108 = sphi 0, %s92
      %s112 = sphi 0, %s112
      %s114 = sphi 0, %s112
      %s115 = sphi 0, %s114
      %s129 = sphi 0, %s115
      %s133 = sphi 0, %s133
      %s135 = sphi 0, %s133
      %s136 = sphi 0, %s135
      %s150 = sphi 0, %s136
      %s154 = sphi 0, %s154
      %s156 = sphi 0, %s154
      %s157 = sphi 0, %s156
      %s171 = sphi 0, %s157
      %s175 = sphi 0, %s175
      %s177 = sphi 0, %s175
      %s178 = sphi 0, %s177
      %s192 = sphi 0, %s178
      %s196 = sphi 0, %s196
      %s198 = sphi 0, %s196
      %s199 = sphi 0, %s198
      %s213 = sphi 0, %s199
      %s217 = sphi 0, %s217
      %s219 = sphi 0, %s217
      %s220 = sphi 0, %s219
      %s234 = sphi 0, %s220
      %s240 = sphi 0, %s242
      %s243 = sphi 0, %s240
      %s244 = sphi 0, %s243
      %s260 = sphi 0, %s244
    $region4: #{tpu_custom_call.1} parent=1 // loop_header_branch
      %29 = sbr.rel (%p27) target = $region8
    $region5: #{tpu_custom_call.1} parent=1 // loop_body
      %s31 = ssub.s32 %s26, 1
      %s32 = ssub.s32 %s26, 2
      %s33 = sadd.s32 %s26, 1
      %s34 = ssub.s32 %s26, %s33
      %p35 = scmp.eq.s32.totalorder %s34, 0
      %s37 = sadd.s32 %s36, 1
      %s38 = scalar_select %p35, %s36, %s37
      %p41 = pneg %p35
      %p42 = scmp.eq.s32.totalorder %s26, 1
      %p43 = por %p41, %p42
      %p44 = scmp.ne.s32.totalorder %s36, %s39
      %p45 = scmp.eq.s32.totalorder %s26, 0
      %p46 = por %p44, %p45
      %p47 = scmp.ne.s32.totalorder %s36, %s39
      %p48 = scmp.eq.s32.totalorder %s31, 1
      %p49 = por %p47, %p48
      %p50 = scmp.ne.s32.totalorder %s39, %s40
      %p51 = scmp.eq.s32.totalorder %s31, 0
      %p52 = por %p50, %p51
      %p53 = scmp.ne.s32.totalorder %s39, %s40
      %p54 = scmp.eq.s32.totalorder %s32, 1
      %p55 = por %p53, %p54
      %p57 = scmp.ne.s32.totalorder %s40, %s56
      %p58 = scmp.eq.s32.totalorder %s32, 0
      %p59 = por %p57, %p58
      %s60 = ssub.s32 %s26, %s33
      %p61 = scmp.eq.s32.totalorder %s60, 0
      %s63 = sadd.s32 %s62, 1
      %s64 = scalar_select %p61, %s62, %s63
      %p67 = pneg %p61
      %p68 = scmp.eq.s32.totalorder %s26, 1
      %p69 = por %p67, %p68
      %p70 = scmp.ne.s32.totalorder %s62, %s65
      %p71 = scmp.eq.s32.totalorder %s26, 0
      %p72 = por %p70, %p71
      %p73 = scmp.ne.s32.totalorder %s62, %s65
      %p74 = scmp.eq.s32.totalorder %s31, 1
      %p75 = por %p73, %p74
      %p76 = scmp.ne.s32.totalorder %s65, %s66
      %p77 = scmp.eq.s32.totalorder %s31, 0
      %p78 = por %p76, %p77
      %p79 = scmp.ne.s32.totalorder %s65, %s66
      %p80 = scmp.eq.s32.totalorder %s32, 1
      %p81 = por %p79, %p80
      %p83 = scmp.ne.s32.totalorder %s66, %s82
      %p84 = scmp.eq.s32.totalorder %s32, 0
      %p85 = por %p83, %p84
      %s86 = ssub.s32 %s26, %s33
      %p87 = scmp.eq.s32.totalorder %s86, 0
      %s89 = sadd.s32 %s88, 1
      %s90 = scalar_select %p87, %s88, %s89
      %p93 = pneg %p87
      %p94 = scmp.eq.s32.totalorder %s26, 1
      %p95 = por %p93, %p94
      %p96 = scmp.ne.s32.totalorder %s88, %s91
      %p97 = scmp.eq.s32.totalorder %s26, 0
      %p98 = por %p96, %p97
      %p99 = scmp.ne.s32.totalorder %s88, %s91
      %p100 = scmp.eq.s32.totalorder %s31, 1
      %p101 = por %p99, %p100
      %p102 = scmp.ne.s32.totalorder %s91, %s92
      %p103 = scmp.eq.s32.totalorder %s31, 0
      %p104 = por %p102, %p103
      %p105 = scmp.ne.s32.totalorder %s91, %s92
      %p106 = scmp.eq.s32.totalorder %s32, 1
      %p107 = por %p105, %p106
      %p109 = scmp.ne.s32.totalorder %s92, %s108
      %p110 = scmp.eq.s32.totalorder %s32, 0
      %p111 = por %p109, %p110
      %s113 = sadd.s32 %s112, 1
      %p116 = scmp.eq.s32.totalorder %s26, 1
      %p117 = scmp.ne.s32.totalorder %s112, %s114
      %p118 = scmp.eq.s32.totalorder %s26, 0
      %p119 = por %p117, %p118
      %p120 = scmp.ne.s32.totalorder %s112, %s114
      %p121 = scmp.eq.s32.totalorder %s31, 1
      %p122 = por %p120, %p121
      %p123 = scmp.ne.s32.totalorder %s114, %s115
      %p124 = scmp.eq.s32.totalorder %s31, 0
      %p125 = por %p123, %p124
      %p126 = scmp.ne.s32.totalorder %s114, %s115
      %p127 = scmp.eq.s32.totalorder %s32, 1
      %p128 = por %p126, %p127
      %p130 = scmp.ne.s32.totalorder %s115, %s129
      %p131 = scmp.eq.s32.totalorder %s32, 0
      %p132 = por %p130, %p131
      %s134 = sadd.s32 %s133, 1
      %p137 = scmp.eq.s32.totalorder %s26, 1
      %p138 = scmp.ne.s32.totalorder %s133, %s135
      %p139 = scmp.eq.s32.totalorder %s26, 0
      %p140 = por %p138, %p139
      %p141 = scmp.ne.s32.totalorder %s133, %s135
      %p142 = scmp.eq.s32.totalorder %s31, 1
      %p143 = por %p141, %p142
      %p144 = scmp.ne.s32.totalorder %s135, %s136
      %p145 = scmp.eq.s32.totalorder %s31, 0
      %p146 = por %p144, %p145
      %p147 = scmp.ne.s32.totalorder %s135, %s136
      %p148 = scmp.eq.s32.totalorder %s32, 1
      %p149 = por %p147, %p148
      %p151 = scmp.ne.s32.totalorder %s136, %s150
      %p152 = scmp.eq.s32.totalorder %s32, 0
      %p153 = por %p151, %p152
      %s155 = sadd.s32 %s154, 1
      %p158 = scmp.eq.s32.totalorder %s26, 1
      %p159 = scmp.ne.s32.totalorder %s154, %s156
      %p160 = scmp.eq.s32.totalorder %s26, 0
      %p161 = por %p159, %p160
      %p162 = scmp.ne.s32.totalorder %s154, %s156
      %p163 = scmp.eq.s32.totalorder %s31, 1
      %p164 = por %p162, %p163
      %p165 = scmp.ne.s32.totalorder %s156, %s157
      %p166 = scmp.eq.s32.totalorder %s31, 0
      %p167 = por %p165, %p166
      %p168 = scmp.ne.s32.totalorder %s156, %s157
      %p169 = scmp.eq.s32.totalorder %s32, 1
      %p170 = por %p168, %p169
      %p172 = scmp.ne.s32.totalorder %s157, %s171
      %p173 = scmp.eq.s32.totalorder %s32, 0
      %p174 = por %p172, %p173
      %s176 = sadd.s32 %s175, 1
      %p179 = scmp.eq.s32.totalorder %s26, 1
      %p180 = scmp.ne.s32.totalorder %s175, %s177
      %p181 = scmp.eq.s32.totalorder %s26, 0
      %p182 = por %p180, %p181
      %p183 = scmp.ne.s32.totalorder %s175, %s177
      %p184 = scmp.eq.s32.totalorder %s31, 1
      %p185 = por %p183, %p184
      %p186 = scmp.ne.s32.totalorder %s177, %s178
      %p187 = scmp.eq.s32.totalorder %s31, 0
      %p188 = por %p186, %p187
      %p189 = scmp.ne.s32.totalorder %s177, %s178
      %p190 = scmp.eq.s32.totalorder %s32, 1
      %p191 = por %p189, %p190
      %p193 = scmp.ne.s32.totalorder %s178, %s192
      %p194 = scmp.eq.s32.totalorder %s32, 0
      %p195 = por %p193, %p194
      %s197 = sadd.s32 %s196, 1
      %p200 = scmp.eq.s32.totalorder %s26, 1
      %p201 = scmp.ne.s32.totalorder %s196, %s198
      %p202 = scmp.eq.s32.totalorder %s26, 0
      %p203 = por %p201, %p202
      %p204 = scmp.ne.s32.totalorder %s196, %s198
      %p205 = scmp.eq.s32.totalorder %s31, 1
      %p206 = por %p204, %p205
      %p207 = scmp.ne.s32.totalorder %s198, %s199
      %p208 = scmp.eq.s32.totalorder %s31, 0
      %p209 = por %p207, %p208
      %p210 = scmp.ne.s32.totalorder %s198, %s199
      %p211 = scmp.eq.s32.totalorder %s32, 1
      %p212 = por %p210, %p211
      %p214 = scmp.ne.s32.totalorder %s199, %s213
      %p215 = scmp.eq.s32.totalorder %s32, 0
      %p216 = por %p214, %p215
      %s218 = sadd.s32 %s217, 1
      %p221 = scmp.eq.s32.totalorder %s26, 1
      %p222 = scmp.ne.s32.totalorder %s217, %s219
      %p223 = scmp.eq.s32.totalorder %s26, 0
      %p224 = por %p222, %p223
      %p225 = scmp.ne.s32.totalorder %s217, %s219
      %p226 = scmp.eq.s32.totalorder %s31, 1
      %p227 = por %p225, %p226
      %p228 = scmp.ne.s32.totalorder %s219, %s220
      %p229 = scmp.eq.s32.totalorder %s31, 0
      %p230 = por %p228, %p229
      %p231 = scmp.ne.s32.totalorder %s219, %s220
      %p232 = scmp.eq.s32.totalorder %s32, 1
      %p233 = por %p231, %p232
      %p235 = scmp.ne.s32.totalorder %s220, %s234
      %p236 = scmp.eq.s32.totalorder %s32, 0
      %p237 = por %p235, %p236
      %s238 = ssub.s32 %s26, %s33
      %p239 = scmp.eq.s32.totalorder %s238, 0
      %s241 = sadd.s32 %s240, 1
      %s242 = scalar_select %p239, %s240, %s241
      %p245 = pneg %p239
      %p246 = scmp.eq.s32.totalorder %s26, 1
      %p247 = por %p245, %p246
      %p248 = scmp.ne.s32.totalorder %s240, %s243
      %p249 = scmp.eq.s32.totalorder %s26, 0
      %p250 = por %p248, %p249
      %p251 = scmp.ne.s32.totalorder %s240, %s243
      %p252 = scmp.eq.s32.totalorder %s31, 1
      %p253 = por %p251, %p252
      %p254 = scmp.ne.s32.totalorder %s243, %s244
      %p255 = scmp.eq.s32.totalorder %s31, 0
      %p256 = por %p254, %p255
      %p257 = scmp.ne.s32.totalorder %s243, %s244
      %p258 = scmp.eq.s32.totalorder %s32, 1
      %p259 = por %p257, %p258
      %p261 = scmp.ne.s32.totalorder %s244, %s260
      %p262 = scmp.eq.s32.totalorder %s32, 0
      %p263 = por %p261, %p262
      %p264 = scmp.le.s32.totalorder 1, %s26
      %p265 = scmp.lt.s32.totalorder %s26, 3
      %p266 = pnand %p264, %p265
      %p267 = pneg %p266
      // Predicated region
      $region9: #{tpu_custom_call.1} parent=5 // pred_check
        _
      $region10: #{tpu_custom_call.1} parent=5 // pred_check_branch
        %269 = sbr.rel (%p266) target = $region12
      $region11: #{tpu_custom_call.1} parent=5 // pred_region
        %s270 = ssub.s32 %s26, 1
        // Predicated region
        $region13: #{tpu_custom_call.1} parent=11 // pred_check
          %p271 = pneg %p125
        $region14: #{tpu_custom_call.1} parent=11 // pred_check_branch
          %273 = sbr.rel (%p271) target = $region16
        $region15: #{tpu_custom_call.1} parent=11 // pred_region
          %275 = vsyncadd [#allocation9], 0
          %s276 = sshll.u32 %s3, 4
          %s277 = int_to_ptr.hbm [resolvable:$true] %s276
          %s278 = sshll.u32 [#allocation8], 4
          %s279 = int_to_ptr.vmem [resolvable:$true] %s278
          %284 = dma.hbm_to_vmem [thread:$0]  %s277, 256, %s279, [#allocation9], 64, 64, 4
        $region16: #{tpu_custom_call.1} parent=11 // pred_fallthru
          _
        // Predicated region
        $region17: #{tpu_custom_call.1} parent=11 // pred_check
          %p285 = pneg %p146
        $region18: #{tpu_custom_call.1} parent=11 // pred_check_branch
          %287 = sbr.rel (%p285) target = $region20
        $region19: #{tpu_custom_call.1} parent=11 // pred_region
          _
        $region20: #{tpu_custom_call.1} parent=11 // pred_fallthru
          _
        // Predicated region
        $region21: #{tpu_custom_call.1} parent=11 // pred_check
          %p288 = pneg %p167
        $region22: #{tpu_custom_call.1} parent=11 // pred_check_branch
          %290 = sbr.rel (%p288) target = $region24
        $region23: #{tpu_custom_call.1} parent=11 // pred_region
          %292 = vsyncadd [#allocation9], 0
          %s293 = sshll.u32 %s5, 4
          %s294 = int_to_ptr.hbm [resolvable:$true] %s293
          %s295 = sshll.u32 [#allocation10], 4
          %s296 = int_to_ptr.vmem [resolvable:$true] %s295
          %301 = dma.hbm_to_vmem [thread:$0]  %s294, 256, %s296, [#allocation9], 64, 64, 4
        $region24: #{tpu_custom_call.1} parent=11 // pred_fallthru
          _
        // Predicated region
        $region25: #{tpu_custom_call.1} parent=11 // pred_check
          %p302 = pneg %p188
        $region26: #{tpu_custom_call.1} parent=11 // pred_check_branch
          %304 = sbr.rel (%p302) target = $region28
        $region27: #{tpu_custom_call.1} parent=11 // pred_region
          %306 = vsyncadd [#allocation12], 0
          %s307 = sshll.u32 %s6, 4
          %s308 = int_to_ptr.hbm [resolvable:$true] %s307
          %s309 = sshll.u32 [#allocation11], 4
          %s310 = int_to_ptr.vmem [resolvable:$true] %s309
          %315 = dma.hbm_to_vmem [thread:$0]  %s308, 256, %s310, [#allocation12], 64, 64, 4
        $region28: #{tpu_custom_call.1} parent=11 // pred_fallthru
          _
        // Predicated region
        $region29: #{tpu_custom_call.1} parent=11 // pred_check
          %p316 = pneg %p209
        $region30: #{tpu_custom_call.1} parent=11 // pred_check_branch
          %318 = sbr.rel (%p316) target = $region32
        $region31: #{tpu_custom_call.1} parent=11 // pred_region
          %320 = vsyncadd [#allocation12], 0
          %s321 = sshll.u32 %s7, 4
          %s322 = int_to_ptr.hbm [resolvable:$true] %s321
          %s323 = sshll.u32 [#allocation13], 4
          %s324 = int_to_ptr.vmem [resolvable:$true] %s323
          %329 = dma.hbm_to_vmem [thread:$0]  %s322, 256, %s324, [#allocation12], 64, 64, 4
        $region32: #{tpu_custom_call.1} parent=11 // pred_fallthru
          _
        // Predicated region
        $region33: #{tpu_custom_call.1} parent=11 // pred_check
          %p330 = pneg %p230
        $region34: #{tpu_custom_call.1} parent=11 // pred_check_branch
          %332 = sbr.rel (%p330) target = $region36
        $region35: #{tpu_custom_call.1} parent=11 // pred_region
          _
        $region36: #{tpu_custom_call.1} parent=11 // pred_fallthru
          _
      $region12: #{tpu_custom_call.1} parent=5 // pred_fallthru
        _
      %p333 = scmp.lt.s32.totalorder %s26, 2
      // Predicated region
      $region37: #{tpu_custom_call.1} parent=5 // pred_check
        %p334 = pneg %p333
      $region38: #{tpu_custom_call.1} parent=5 // pred_check_branch
        %336 = sbr.rel (%p334) target = $region40
      $region39: #{tpu_custom_call.1} parent=5 // pred_region
        // Predicated region
        $region41: #{tpu_custom_call.1} parent=39 // pred_check
          %p337 = pneg %p46
        $region42: #{tpu_custom_call.1} parent=39 // pred_check_branch
          %339 = sbr.rel (%p337) target = $region44
        $region43: #{tpu_custom_call.1} parent=39 // pred_region
          %s340 = sand.u32 %s36, 1
          %s341 = scalar_lea.sflag [#allocation3], %s340
          %s342 = sand.u32 %s36, 1
          %s343 = smul.addr %s342, 8
          %s344 = scalar_lea.vmem [#allocation2], %s343
          %346 = vsyncadd %s341, 0
          %s347 = smul.addr %s26, 8
          %s348 = scalar_lea.hbm %s0, %s347
          %s350 = sshll.u32 %s348, 4
          %s351 = int_to_ptr.hbm [resolvable:$true] %s350
          %s352 = sshll.u32 %s344, 4
          %s353 = int_to_ptr.vmem [resolvable:$true] %s352
          %355 = dma.hbm_to_vmem [thread:$0]  %s351, 128, %s353, %s341
        $region44: #{tpu_custom_call.1} parent=39 // pred_fallthru
          _
        // Predicated region
        $region45: #{tpu_custom_call.1} parent=39 // pred_check
          %p356 = pneg %p72
        $region46: #{tpu_custom_call.1} parent=39 // pred_check_branch
          %358 = sbr.rel (%p356) target = $region48
        $region47: #{tpu_custom_call.1} parent=39 // pred_region
          %s359 = sand.u32 %s26, 1
          %s360 = scalar_lea.sflag [#allocation6], %s359
          %s361 = sand.u32 %s62, 1
          %s362 = smul.addr %s361, 8
          %s363 = scalar_lea.vmem [#allocation5], %s362
          %365 = vsyncadd %s360, 0
          %s366 = smul.addr %s26, 8
          %s367 = scalar_lea.hbm %s1, %s366
          %s369 = sshll.u32 %s367, 4
          %s370 = int_to_ptr.hbm [resolvable:$true] %s369
          %s371 = sshll.u32 %s363, 4
          %s372 = int_to_ptr.vmem [resolvable:$true] %s371
          %374 = dma.hbm_to_vmem [thread:$0]  %s370, 128, %s372, %s360
        $region48: #{tpu_custom_call.1} parent=39 // pred_fallthru
          _
        // Predicated region
        $region49: #{tpu_custom_call.1} parent=39 // pred_check
          %p375 = pneg %p98
        $region50: #{tpu_custom_call.1} parent=39 // pred_check_branch
          %377 = sbr.rel (%p375) target = $region52
        $region51: #{tpu_custom_call.1} parent=39 // pred_region
          %s378 = sand.u32 %s26, 1
          %s379 = scalar_lea.sflag [#allocation6], %s378
          %s380 = sand.u32 %s88, 1
          %s381 = smul.addr %s380, 8
          %s382 = scalar_lea.vmem [#allocation7], %s381
          %384 = vsyncadd %s379, 0
          %s385 = smul.addr %s26, 8
          %s386 = scalar_lea.hbm %s2, %s385
          %s388 = sshll.u32 %s386, 4
          %s389 = int_to_ptr.hbm [resolvable:$true] %s388
          %s390 = sshll.u32 %s382, 4
          %s391 = int_to_ptr.vmem [resolvable:$true] %s390
          %393 = dma.hbm_to_vmem [thread:$0]  %s389, 128, %s391, %s379
        $region52: #{tpu_custom_call.1} parent=39 // pred_fallthru
          _
      $region40: #{tpu_custom_call.1} parent=5 // pred_fallthru
        _
      %p394 = scmp.le.s32.totalorder 1, %s26
      %p395 = scmp.lt.s32.totalorder %s26, 3
      %p396 = pnand %p394, %p395
      %p397 = pneg %p396
      // Predicated region
      $region53: #{tpu_custom_call.1} parent=5 // pred_check
        _
      $region54: #{tpu_custom_call.1} parent=5 // pred_check_branch
        %399 = sbr.rel (%p396) target = $region56
      $region55: #{tpu_custom_call.1} parent=5 // pred_region
        %s400 = ssub.s32 %s26, 1
        %s401 = sand.u32 %s39, 1
        %s402 = scalar_lea.sflag [#allocation3], %s401
        %s403 = sand.u32 %s39, 1
        %s404 = smul.addr %s403, 8
        %s405 = scalar_lea.vmem [#allocation2], %s404
        // Predicated region
        $region57: #{tpu_custom_call.1} parent=55 // pred_check
          %p406 = pneg %p52
        $region58: #{tpu_custom_call.1} parent=55 // pred_check_branch
          %408 = sbr.rel (%p406) target = $region60
        $region59: #{tpu_custom_call.1} parent=55 // pred_region
          %410 = dma.done %s402, 128
        $region60: #{tpu_custom_call.1} parent=55 // pred_fallthru
          _
        %s411 = sand.u32 %s31, 1
        %s412 = scalar_lea.sflag [#allocation6], %s411
        %s413 = sand.u32 %s65, 1
        %s414 = smul.addr %s413, 8
        %s415 = scalar_lea.vmem [#allocation5], %s414
        // Predicated region
        $region61: #{tpu_custom_call.1} parent=55 // pred_check
          %p416 = pneg %p78
        $region62: #{tpu_custom_call.1} parent=55 // pred_check_branch
          %418 = sbr.rel (%p416) target = $region64
        $region63: #{tpu_custom_call.1} parent=55 // pred_region
          %420 = dma.done %s412, 128
        $region64: #{tpu_custom_call.1} parent=55 // pred_fallthru
          _
        %s421 = sand.u32 %s31, 1
        %s422 = scalar_lea.sflag [#allocation6], %s421
        %s423 = sand.u32 %s91, 1
        %s424 = smul.addr %s423, 8
        %s425 = scalar_lea.vmem [#allocation7], %s424
        // Predicated region
        $region65: #{tpu_custom_call.1} parent=55 // pred_check
          %p426 = pneg %p104
        $region66: #{tpu_custom_call.1} parent=55 // pred_check_branch
          %428 = sbr.rel (%p426) target = $region68
        $region67: #{tpu_custom_call.1} parent=55 // pred_region
          %430 = dma.done %s422, 128
        $region68: #{tpu_custom_call.1} parent=55 // pred_fallthru
          _
        // Predicated region
        $region69: #{tpu_custom_call.1} parent=55 // pred_check
          %p431 = pneg %p125
        $region70: #{tpu_custom_call.1} parent=55 // pred_check_branch
          %433 = sbr.rel (%p431) target = $region72
        $region71: #{tpu_custom_call.1} parent=55 // pred_region
          %435 = dma.done [#allocation9], 256
        $region72: #{tpu_custom_call.1} parent=55 // pred_fallthru
          _
        // Predicated region
        $region73: #{tpu_custom_call.1} parent=55 // pred_check
          %p436 = pneg %p167
        $region74: #{tpu_custom_call.1} parent=55 // pred_check_branch
          %438 = sbr.rel (%p436) target = $region76
        $region75: #{tpu_custom_call.1} parent=55 // pred_region
          %440 = dma.done [#allocation9], 256
        $region76: #{tpu_custom_call.1} parent=55 // pred_fallthru
          _
        // Predicated region
        $region77: #{tpu_custom_call.1} parent=55 // pred_check
          %p441 = pneg %p188
        $region78: #{tpu_custom_call.1} parent=55 // pred_check_branch
          %443 = sbr.rel (%p441) target = $region80
        $region79: #{tpu_custom_call.1} parent=55 // pred_region
          %445 = dma.done [#allocation12], 256
        $region80: #{tpu_custom_call.1} parent=55 // pred_fallthru
          _
        // Predicated region
        $region81: #{tpu_custom_call.1} parent=55 // pred_check
          %p446 = pneg %p209
        $region82: #{tpu_custom_call.1} parent=55 // pred_check_branch
          %448 = sbr.rel (%p446) target = $region84
        $region83: #{tpu_custom_call.1} parent=55 // pred_region
          %450 = dma.done [#allocation12], 256
        $region84: #{tpu_custom_call.1} parent=55 // pred_fallthru
          _
        %s451 = sand.u32 %s39, 1
        %s452 = scalar_lea.sflag [#allocation3], %s451
        %s453 = sand.u32 %s39, 1
        %s454 = smul.addr %s453, 8
        %s455 = scalar_lea.vmem [#allocation2], %s454
        %p456 = pneg %p52
        %p457 = pneg %p49
        %s458 = sand.u32 %s31, 1
        %s459 = scalar_lea.sflag [#allocation6], %s458
        %s460 = sand.u32 %s65, 1
        %s461 = smul.addr %s460, 8
        %s462 = scalar_lea.vmem [#allocation5], %s461
        %p463 = pneg %p78
        %p464 = pneg %p75
        %s465 = sand.u32 %s31, 1
        %s466 = scalar_lea.sflag [#allocation6], %s465
        %s467 = sand.u32 %s91, 1
        %s468 = smul.addr %s467, 8
        %s469 = scalar_lea.vmem [#allocation7], %s468
        %p470 = pneg %p104
        %p471 = pneg %p101
        %p472 = pneg %p125
        %p473 = pneg %p122
        %p474 = pneg %p146
        %p475 = pneg %p143
        %p476 = pneg %p167
        %p477 = pneg %p164
        %p478 = pneg %p188
        %p479 = pneg %p185
        %p480 = pneg %p209
        %p481 = pneg %p206
        %p482 = pneg %p230
        %p483 = pneg %p227
        %p484 = pneg %p256
        %p485 = pneg %p253
        %s486 = sand.u32 %s243, 1
        %s487 = scalar_lea.sflag [#allocation4], %s486
        %s488 = sand.u32 %s243, 1
        %s489 = smul.addr %s488, 8
        %s490 = scalar_lea.vmem [#allocation14], %s489
        %v492 = vld [vmem:[%s405] sm:$0xff]
        %v493 = vpack.c.bf16 %v492, %v492
        %v494 = vld [vmem:[%s415] sm:$0xff]
        %v495 = vpack.c.bf16 %v494, %v494
        %v496 = vld [vmem:[%s425] sm:$0xff]
        %v497 = vpack.c.bf16 %v496, %v496
        %v498 = vld [vmem:[#allocation8] sm:$0xf]
        %v499 = vld [vmem:[#allocation8 + $0x4] sm:$0xf]
        %v500 = vld [vmem:[#allocation8 + $0x8] sm:$0xf]
        %v501 = vld [vmem:[#allocation8 + $0xc] sm:$0xf]
        %v502 = vld [vmem:[%s4] sm:$0x1]
        %v504 = vperm.slane %v502, 0
        %v510 = vunpack.c.l.b16 %v498
        %v511 = vunpack.c.l.b16 %v499
        %v512 = vunpack.c.l.b16 %v500
        %v513 = vunpack.c.l.b16 %v501
        %v514 = vpack.c.b16 %v511, %v510
        %v515 = vpack.c.b16 %v513, %v512
        %vm518 = vcmask 261120
        %v520 = vsel %vm518, %v493, 0
        %522 = vmatpush.bf16.msra.mxu0 0
        %523 = vmatpush.bf16.msra.mxu0 0
        %524 = vmatpush.bf16.msra.mxu0 0
        %525 = vmatpush.bf16.msra.mxu0 0
        %526 = vmatpush.bf16.msra.mxu0 0
        %527 = vmatpush.bf16.msra.mxu0 0
        %528 = vmatpush.bf16.msra.mxu0 %v515
        %529 = vmatpush.bf16.msra.mxu0 %v514
        %530 = vmatmul.bf16.gmra.mxu0 %v520
        %v531 = vpop.f32.mrf.mxu0
        %v532 = vadd.f32 %v504, %v531
        %v533 = vpop.f32.mrf.mxu0
        %534 = vdwg.mxu0
        %v535 = vpack.c.bf16 %v532, %v532
        %v536 = vld [vmem:[#allocation10] sm:$0xf]
        %v537 = vld [vmem:[#allocation10 + $0x4] sm:$0xf]
        %v538 = vld [vmem:[#allocation10 + $0x8] sm:$0xf]
        %v539 = vld [vmem:[#allocation10 + $0xc] sm:$0xf]
        %v544 = vunpack.c.l.b16 %v536
        %v545 = vunpack.c.l.b16 %v537
        %v546 = vunpack.c.l.b16 %v538
        %v547 = vunpack.c.l.b16 %v539
        %v548 = vpack.c.b16 %v545, %v544
        %v549 = vpack.c.b16 %v547, %v546
        %v553 = vsel %vm518, %v495, 0
        %555 = vmatpush.bf16.msra.mxu0 0
        %556 = vmatpush.bf16.msra.mxu0 0
        %557 = vmatpush.bf16.msra.mxu0 0
        %558 = vmatpush.bf16.msra.mxu0 0
        %559 = vmatpush.bf16.msra.mxu0 0
        %560 = vmatpush.bf16.msra.mxu0 0
        %561 = vmatpush.bf16.msra.mxu0 %v549
        %562 = vmatpush.bf16.msra.mxu0 %v548
        %563 = vmatmul.bf16.gmra.mxu0 %v553
        %v564 = vpop.f32.mrf.mxu0
        %v565 = vadd.f32 0.0, %v564
        %v566 = vpop.f32.mrf.mxu0
        %567 = vdwg.mxu0
        %v568 = vpack.c.bf16 %v565, %v565
        %v569 = vld [vmem:[#allocation11] sm:$0xf]
        %v570 = vld [vmem:[#allocation11 + $0x4] sm:$0xf]
        %v571 = vld [vmem:[#allocation11 + $0x8] sm:$0xf]
        %v572 = vld [vmem:[#allocation11 + $0xc] sm:$0xf]
        %v577 = vunpack.c.l.b16 %v569
        %v578 = vunpack.c.l.b16 %v570
        %v579 = vunpack.c.l.b16 %v571
        %v580 = vunpack.c.l.b16 %v572
        %v581 = vpack.c.b16 %v578, %v577
        %v582 = vpack.c.b16 %v580, %v579
        %v586 = vsel %vm518, %v497, 0
        %588 = vmatpush.bf16.msra.mxu0 0
        %589 = vmatpush.bf16.msra.mxu0 0
        %590 = vmatpush.bf16.msra.mxu0 0
        %591 = vmatpush.bf16.msra.mxu0 0
        %592 = vmatpush.bf16.msra.mxu0 0
        %593 = vmatpush.bf16.msra.mxu0 0
        %594 = vmatpush.bf16.msra.mxu0 %v582
        %595 = vmatpush.bf16.msra.mxu0 %v581
        %596 = vmatmul.bf16.gmra.mxu0 %v586
        %v597 = vpop.f32.mrf.mxu0
        %v598 = vadd.f32 0.0, %v597
        %v599 = vpop.f32.mrf.mxu0
        %600 = vdwg.mxu0
        %v601 = vpack.c.bf16 %v598, %v598
        %vm602 = vcmask 64512
        %v604 = vsel %vm602, %v535, 0
        %v607 = vsel %vm602, %v568, 0
        %609 = vmatpush.bf16.xpose.msra.mxu0 0
        %610 = vmatpush.bf16.xpose.msra.mxu0 0
        %611 = vmatpush.bf16.xpose.msra.mxu0 0
        %612 = vmatpush.bf16.xpose.msra.mxu0 0
        %613 = vmatpush.bf16.xpose.msra.mxu0 0
        %614 = vmatpush.bf16.xpose.msra.mxu0 0
        %615 = vmatpush.bf16.xpose.msra.mxu0 0
        %616 = vmatpush.bf16.xpose.msra.mxu0 %v607
        %617 = vmatmul.bf16.gmra.mxu0 %v604
        %v618 = vpop.f32.mrf.mxu0
        %v619 = vadd.f32 0.0, %v618
        %v620 = vpop.f32.mrf.mxu0
        %621 = vdwg.mxu0
        %v622 = vsel %vm602, %v619, -inf
        %623 = vmax.xlane.f32.xlu0 %v622
        %v624 = vpop.xlane.xlu0 %623
        %v625 = vsub.f32 %v619, %v624
        %v626 = vmul.f32 %v625, 1.442695
        %v627 = vpow.pop %v626
        %v628 = vsel %vm602, %v627, 0.0
        %629 = vadd.xlane.f32.xlu0 %v628
        %v630 = vpop.xlane.xlu0 %629
        %v631 = vrcp.pop %v630
        %v632 = vmul.f32 %v627, %v631
        %v633 = vpack.c.bf16 %v632, %v632
        %v635 = vsel %vm602, %v633, 0
        %vm637 = vcmask 1043456
        %v639 = vsel %vm637, %v601, 0
        %641 = vmatpush.bf16.msra.mxu0 0
        %642 = vmatpush.bf16.msra.mxu0 0
        %643 = vmatpush.bf16.msra.mxu0 0
        %644 = vmatpush.bf16.msra.mxu0 0
        %645 = vmatpush.bf16.msra.mxu0 0
        %646 = vmatpush.bf16.msra.mxu0 0
        %647 = vmatpush.bf16.msra.mxu0 0
        %648 = vmatpush.bf16.msra.mxu0 %v639
        %649 = vmatmul.bf16.gmra.mxu0 %v635
        %v650 = vpop.f32.mrf.mxu0
        %v651 = vadd.f32 0.0, %v650
        %v652 = vpop.f32.mrf.mxu0
        %653 = vdwg.mxu0
        %v654 = vpack.c.bf16 %v651, %v651
        %v656 = vunpack.c.l.b16 %v535
        %v657 = vpack.c.b16 %v656, %v656
        %658 = vrot.lane.b32.xlu0 %v657, 120
        %v659 = vpop.permute.xlu0 %658
        %v661 = vunpack.c.l.b16 %v568
        %v662 = vpack.c.b16 %v661, %v661
        %663 = vrot.lane.b32.xlu0 %v662, 120
        %v664 = vpop.permute.xlu0 %663
        %v666 = vsel %vm602, %v659, 0
        %v669 = vsel %vm602, %v664, 0
        %671 = vmatpush.bf16.xpose.msra.mxu0 0
        %672 = vmatpush.bf16.xpose.msra.mxu0 0
        %673 = vmatpush.bf16.xpose.msra.mxu0 0
        %674 = vmatpush.bf16.xpose.msra.mxu0 0
        %675 = vmatpush.bf16.xpose.msra.mxu0 0
        %676 = vmatpush.bf16.xpose.msra.mxu0 0
        %677 = vmatpush.bf16.xpose.msra.mxu0 0
        %678 = vmatpush.bf16.xpose.msra.mxu0 %v669
        %679 = vmatmul.bf16.gmra.mxu0 %v666
        %v680 = vpop.f32.mrf.mxu0
        %v681 = vadd.f32 0.0, %v680
        %v682 = vpop.f32.mrf.mxu0
        %683 = vdwg.mxu0
        %v684 = vsel %vm602, %v681, -inf
        %685 = vmax.xlane.f32.xlu0 %v684
        %v686 = vpop.xlane.xlu0 %685
        %v687 = vsub.f32 %v681, %v686
        %v688 = vmul.f32 %v687, 1.442695
        %v689 = vpow.pop %v688
        %v690 = vsel %vm602, %v689, 0.0
        %691 = vadd.xlane.f32.xlu0 %v690
        %v692 = vpop.xlane.xlu0 %691
        %v693 = vrcp.pop %v692
        %v694 = vmul.f32 %v689, %v693
        %v695 = vpack.c.bf16 %v694, %v694
        %v697 = vunpack.c.l.b16 %v601
        %v698 = vpack.c.b16 %v697, %v697
        %699 = vrot.lane.b32.xlu0 %v698, 120
        %v700 = vpop.permute.xlu0 %699
        %v702 = vsel %vm602, %v695, 0
        %v705 = vsel %vm637, %v700, 0
        %707 = vmatpush.bf16.msra.mxu0 0
        %708 = vmatpush.bf16.msra.mxu0 0
        %709 = vmatpush.bf16.msra.mxu0 0
        %710 = vmatpush.bf16.msra.mxu0 0
        %711 = vmatpush.bf16.msra.mxu0 0
        %712 = vmatpush.bf16.msra.mxu0 0
        %713 = vmatpush.bf16.msra.mxu0 0
        %714 = vmatpush.bf16.msra.mxu0 %v705
        %715 = vmatmul.bf16.gmra.mxu0 %v702
        %v716 = vpop.f32.mrf.mxu0
        %v717 = vadd.f32 0.0, %v716
        %v718 = vpop.f32.mrf.mxu0
        %719 = vdwg.mxu0
        %v720 = vpack.c.bf16 %v717, %v717
        %721 = vrot.lane.b32.xlu0 %v657, 112
        %v722 = vpop.permute.xlu0 %721
        %723 = vrot.lane.b32.xlu0 %v662, 112
        %v724 = vpop.permute.xlu0 %723
        %v726 = vsel %vm602, %v722, 0
        %v729 = vsel %vm602, %v724, 0
        %731 = vmatpush.bf16.xpose.msra.mxu0 0
        %732 = vmatpush.bf16.xpose.msra.mxu0 0
        %733 = vmatpush.bf16.xpose.msra.mxu0 0
        %734 = vmatpush.bf16.xpose.msra.mxu0 0
        %735 = vmatpush.bf16.xpose.msra.mxu0 0
        %736 = vmatpush.bf16.xpose.msra.mxu0 0
        %737 = vmatpush.bf16.xpose.msra.mxu0 0
        %738 = vmatpush.bf16.xpose.msra.mxu0 %v729
        %739 = vmatmul.bf16.gmra.mxu0 %v726
        %v740 = vpop.f32.mrf.mxu0
        %v741 = vadd.f32 0.0, %v740
        %v742 = vpop.f32.mrf.mxu0
        %743 = vdwg.mxu0
        %v744 = vsel %vm602, %v741, -inf
        %745 = vmax.xlane.f32.xlu0 %v744
        %v746 = vpop.xlane.xlu0 %745
        %v747 = vsub.f32 %v741, %v746
        %v748 = vmul.f32 %v747, 1.442695
        %v749 = vpow.pop %v748
        %v750 = vsel %vm602, %v749, 0.0
        %751 = vadd.xlane.f32.xlu0 %v750
        %v752 = vpop.xlane.xlu0 %751
        %v753 = vrcp.pop %v752
        %v754 = vmul.f32 %v749, %v753
        %v755 = vpack.c.bf16 %v754, %v754
        %756 = vrot.lane.b32.xlu0 %v698, 112
        %v757 = vpop.permute.xlu0 %756
        %v759 = vsel %vm602, %v755, 0
        %v762 = vsel %vm637, %v757, 0
        %764 = vmatpush.bf16.msra.mxu0 0
        %765 = vmatpush.bf16.msra.mxu0 0
        %766 = vmatpush.bf16.msra.mxu0 0
        %767 = vmatpush.bf16.msra.mxu0 0
        %768 = vmatpush.bf16.msra.mxu0 0
        %769 = vmatpush.bf16.msra.mxu0 0
        %770 = vmatpush.bf16.msra.mxu0 0
        %771 = vmatpush.bf16.msra.mxu0 %v762
        %772 = vmatmul.bf16.gmra.mxu0 %v759
        %v773 = vpop.f32.mrf.mxu0
        %v774 = vadd.f32 0.0, %v773
        %v775 = vpop.f32.mrf.mxu0
        %776 = vdwg.mxu0
        %v777 = vpack.c.bf16 %v774, %v774
        %778 = vrot.lane.b32.xlu0 %v657, 104
        %v779 = vpop.permute.xlu0 %778
        %780 = vrot.lane.b32.xlu0 %v662, 104
        %v781 = vpop.permute.xlu0 %780
        %v783 = vsel %vm602, %v779, 0
        %v786 = vsel %vm602, %v781, 0
        %788 = vmatpush.bf16.xpose.msra.mxu0 0
        %789 = vmatpush.bf16.xpose.msra.mxu0 0
        %790 = vmatpush.bf16.xpose.msra.mxu0 0
        %791 = vmatpush.bf16.xpose.msra.mxu0 0
        %792 = vmatpush.bf16.xpose.msra.mxu0 0
        %793 = vmatpush.bf16.xpose.msra.mxu0 0
        %794 = vmatpush.bf16.xpose.msra.mxu0 0
        %795 = vmatpush.bf16.xpose.msra.mxu0 %v786
        %796 = vmatmul.bf16.gmra.mxu0 %v783
        %v797 = vpop.f32.mrf.mxu0
        %v798 = vadd.f32 0.0, %v797
        %v799 = vpop.f32.mrf.mxu0
        %800 = vdwg.mxu0
        %v801 = vsel %vm602, %v798, -inf
        %802 = vmax.xlane.f32.xlu0 %v801
        %v803 = vpop.xlane.xlu0 %802
        %v804 = vsub.f32 %v798, %v803
        %v805 = vmul.f32 %v804, 1.442695
        %v806 = vpow.pop %v805
        %v807 = vsel %vm602, %v806, 0.0
        %808 = vadd.xlane.f32.xlu0 %v807
        %v809 = vpop.xlane.xlu0 %808
        %v810 = vrcp.pop %v809
        %v811 = vmul.f32 %v806, %v810
        %v812 = vpack.c.bf16 %v811, %v811
        %813 = vrot.lane.b32.xlu0 %v698, 104
        %v814 = vpop.permute.xlu0 %813
        %v816 = vsel %vm602, %v812, 0
        %v819 = vsel %vm637, %v814, 0
        %821 = vmatpush.bf16.msra.mxu0 0
        %822 = vmatpush.bf16.msra.mxu0 0
        %823 = vmatpush.bf16.msra.mxu0 0
        %824 = vmatpush.bf16.msra.mxu0 0
        %825 = vmatpush.bf16.msra.mxu0 0
        %826 = vmatpush.bf16.msra.mxu0 0
        %827 = vmatpush.bf16.msra.mxu0 0
        %828 = vmatpush.bf16.msra.mxu0 %v819
        %829 = vmatmul.bf16.gmra.mxu0 %v816
        %v830 = vpop.f32.mrf.mxu0
        %v831 = vadd.f32 0.0, %v830
        %v832 = vpop.f32.mrf.mxu0
        %833 = vdwg.mxu0
        %v834 = vpack.c.bf16 %v831, %v831
        %v836 = vunpack.c.l.b16 %v720
        %v837 = vpack.c.b16 %v836, %v836
        %838 = vrot.lane.b32.xlu0 %v837, 8
        %v839 = vpop.permute.xlu0 %838
        %v841 = vunpack.c.l.b16 %v777
        %v842 = vpack.c.b16 %v841, %v841
        %843 = vrot.lane.b32.xlu0 %v842, 16
        %v844 = vpop.permute.xlu0 %843
        %v846 = vunpack.c.l.b16 %v834
        %v847 = vpack.c.b16 %v846, %v846
        %848 = vrot.lane.b32.xlu0 %v847, 24
        %v849 = vpop.permute.xlu0 %848
        %v852 = vsel %vm602, %v654, %v839
        %vm853 = vcmask 130048
        %v855 = vsel %vm853, %v852, %v844
        %vm856 = vcmask 195584
        %v858 = vsel %vm856, %v855, %v849
        %v859 = vld [vmem:[#allocation13] sm:$0xf]
        %v860 = vld [vmem:[#allocation13 + $0x4] sm:$0xf]
        %v861 = vld [vmem:[#allocation13 + $0x8] sm:$0xf]
        %v862 = vld [vmem:[#allocation13 + $0xc] sm:$0xf]
        %v863 = vld [vmem:[%s8] sm:$0x1]
        %v865 = vperm.slane %v863, 0
        %v871 = vunpack.c.l.b16 %v859
        %v872 = vunpack.c.l.b16 %v860
        %v873 = vunpack.c.l.b16 %v861
        %v874 = vunpack.c.l.b16 %v862
        %v875 = vpack.c.b16 %v872, %v871
        %v876 = vpack.c.b16 %v874, %v873
        %v879 = vsel %vm518, %v858, 0
        %881 = vmatpush.bf16.msra.mxu0 0
        %882 = vmatpush.bf16.msra.mxu0 0
        %883 = vmatpush.bf16.msra.mxu0 0
        %884 = vmatpush.bf16.msra.mxu0 0
        %885 = vmatpush.bf16.msra.mxu0 0
        %886 = vmatpush.bf16.msra.mxu0 0
        %887 = vmatpush.bf16.msra.mxu0 %v876
        %888 = vmatpush.bf16.msra.mxu0 %v875
        %889 = vmatmul.bf16.gmra.mxu0 %v879
        %v890 = vpop.f32.mrf.mxu0
        %v891 = vadd.f32 %v865, %v890
        %v892 = vpop.f32.mrf.mxu0
        %893 = vdwg.mxu0
        %894 = vst.msk [vmem:[%s490] sm:$0xff] %vm518, %v891
        %s895 = sand.u32 %s243, 1
        %s896 = scalar_lea.sflag [#allocation4], %s895
        %s897 = sand.u32 %s243, 1
        %s898 = smul.addr %s897, 8
        %s899 = scalar_lea.vmem [#allocation14], %s898
        // Predicated region
        $region85: #{tpu_custom_call.1} parent=55 // pred_check
          %p900 = pneg %p253
        $region86: #{tpu_custom_call.1} parent=55 // pred_check_branch
          %902 = sbr.rel (%p900) target = $region88
        $region87: #{tpu_custom_call.1} parent=55 // pred_region
          %904 = vsyncadd %s896, 0
          %s905 = smul.addr %s31, 8
          %s906 = scalar_lea.hbm %s9, %s905
          %s908 = sshll.u32 %s899, 4
          %s909 = int_to_ptr.vmem [resolvable:$true] %s908
          %s910 = sshll.u32 %s906, 4
          %s911 = int_to_ptr.hbm [resolvable:$true] %s910
          %913 = dma.vmem_to_hbm [thread:$0]  %s909, 128, %s911, %s896
        $region88: #{tpu_custom_call.1} parent=55 // pred_fallthru
          _
      $region56: #{tpu_custom_call.1} parent=5 // pred_fallthru
        _
      %p914 = scmp.le.s32.totalorder 2, %s26
      // Predicated region
      $region89: #{tpu_custom_call.1} parent=5 // pred_check
        %p915 = pneg %p914
      $region90: #{tpu_custom_call.1} parent=5 // pred_check_branch
        %917 = sbr.rel (%p915) target = $region92
      $region91: #{tpu_custom_call.1} parent=5 // pred_region
        %s918 = ssub.s32 %s26, 2
        // Predicated region
        $region93: #{tpu_custom_call.1} parent=91 // pred_check
          %p919 = pneg %p259
        $region94: #{tpu_custom_call.1} parent=91 // pred_check_branch
          %921 = sbr.rel (%p919) target = $region96
        $region95: #{tpu_custom_call.1} parent=91 // pred_region
          %s922 = sand.u32 %s244, 1
          %s923 = scalar_lea.sflag [#allocation4], %s922
          %s924 = sand.u32 %s244, 1
          %s925 = smul.addr %s924, 8
          %s926 = scalar_lea.vmem [#allocation14], %s925
          %928 = dma.done %s923, 128
        $region96: #{tpu_custom_call.1} parent=91 // pred_fallthru
          _
      $region92: #{tpu_custom_call.1} parent=5 // pred_fallthru
        _
    $region6: #{tpu_custom_call.1} parent=1 // loop_footer
      %s30 = sadd.s32 1, %s26
    $region7: #{tpu_custom_call.1} parent=1 // loop_footer_branch
      %25 = sbr.rel target = $region3
    $region8: #{tpu_custom_call.1} parent=1 // loop_exit
      _
    %929 = vsyncpa [#allocation3], 1
    %s930 = scalar_lea.sflag [#allocation3], 1
    %931 = vsyncpa %s930, 1
    %932 = vsyncpa [#allocation6], 1
    %s933 = scalar_lea.sflag [#allocation6], 1
    %934 = vsyncpa %s933, 1
    %935 = vsyncpa [#allocation9], 1
    %936 = vsyncpa [#allocation12], 1
    %937 = vsyncpa [#allocation4], 1
    %s938 = scalar_lea.sflag [#allocation4], 1
    %939 = vsyncpa %s938, 1

</llo_original>
